<compile_context>
chip_gen: v7x
topology: tpu7x:2x2x1
jax: 0.10.0
libtpu: 0.0.40
codegen_flags: <defaults>
</compile_context>

<pallas_src>
import functools
import math

import jax
import jax.numpy as jnp
from jax.experimental import pallas as pl
from jax.experimental.pallas import tpu as pltpu


def _layer_norm(x, gamma, beta, eps):
    mean = jnp.mean(x, axis=-1, keepdims=True)
    var = jnp.mean((x - mean) ** 2, axis=-1, keepdims=True)
    return (x - mean) * jax.lax.rsqrt(var + eps) * gamma + beta


def _gelu_exact(x):
    # F.gelu default: 0.5 * x * (1 + erf(x / sqrt(2)))
    return 0.5 * x * (1.0 + jax.lax.erf(x * (1.0 / math.sqrt(2.0))))


def _encoder_kernel(h_ref, m_ref,
                    wq_ref, bq_ref, wk_ref, bk_ref, wv_ref, bv_ref,
                    wo_ref, bo_ref, g1_ref, b1_ref,
                    wi_ref, bi_ref, wo2_ref, bo2_ref, g2_ref, b2_ref,
                    out_ref, carry_ref, *, num_heads, ln_eps):
    """One SyntaxBertLayer for one batch element; grid = (batch, layer)."""
    f32 = jnp.float32
    bf16 = jnp.bfloat16
    S, D = carry_ref.shape
    layer = pl.program_id(1)

    # Layer 0: (re)load the residual stream for this batch element.
    @pl.when(layer == 0)
    def _():
        carry_ref[...] = h_ref[0].astype(f32)

    x = carry_ref[...]                                     # (S, D) f32 residual
    x_bf = x.astype(bf16)
    # Head-leading replica of the activations so every attention matmul is a
    # plain leading-batch dot_general (no in-kernel head-split relayout).
    xh = jnp.broadcast_to(x_bf[None], (num_heads, S, D))   # hoisted once
    mask = m_ref[...].astype(f32)                          # (1, 1, S) additive

    # ---- self attention: all heads batched; weights are head-major bf16 ----
    # wq / bq are pre-scaled by 1/sqrt(num_attn_heads) on the host.
    q = jnp.einsum('hsd,hde->hse', xh, wq_ref[0],
                   preferred_element_type=f32) + bq_ref[0]        # (H, S, hd)
    k = jnp.einsum('hsd,hde->hse', xh, wk_ref[0],
                   preferred_element_type=f32) + bk_ref[0]
    v = jnp.einsum('hsd,hde->hse', xh, wv_ref[0],
                   preferred_element_type=f32) + bv_ref[0]

    s = jnp.einsum('hqe,hke->hqk', q.astype(bf16), k.astype(bf16),
                   preferred_element_type=f32)                    # (H, S, S)
    s = s + mask                                                  # (1,1,S) bcast
    s = s - jnp.max(s, axis=-1, keepdims=True)                    # f32 stats
    e = jnp.exp(s)
    p = e * pl.reciprocal(jnp.sum(e, axis=-1, keepdims=True), approx=True)
    # TODO(synk): attention-prob dropout (p=0.1) treated as identity (eval mode).

    ctx = jnp.einsum('hqk,hke->hqe', p.astype(bf16), v.astype(bf16),
                     preferred_element_type=f32)                  # (H, S, hd)

    # Output projection: sum_h ctx_h @ Wo_h  ==  concat(heads) @ Wo
    attn = jnp.einsum('hse,hed->hsd', ctx.astype(bf16), wo_ref[0],
                      preferred_element_type=f32)                 # (H, S, D)
    attn = jnp.sum(attn, axis=0) + bo_ref[0]                      # (S, D)
    attn = _layer_norm(attn + x, g1_ref[0], b1_ref[0], ln_eps)

    # ---- intermediate (D -> 4D) with exact GELU ----
    inter = jnp.dot(attn.astype(bf16), wi_ref[0],
                    preferred_element_type=f32) + bi_ref[0]
    inter = _gelu_exact(inter)

    # ---- output (4D -> D) + residual + LayerNorm ----
    out = jnp.dot(inter.astype(bf16), wo2_ref[0],
                  preferred_element_type=f32) + bo2_ref[0]
    out = _layer_norm(out + attn, g2_ref[0], b2_ref[0], ln_eps)

    carry_ref[...] = out                                          # next layer in
    out_ref[...] = out.reshape(1, 1, S, D).astype(out_ref.dtype)


def pack_encoder_params(layer_params, *, num_heads, weight_dtype=jnp.bfloat16):
    """Rearrange per-layer params (weights stored (in, out), biases (1, out))
    into stacked, head-major, bf16 tensors consumed by the fused kernel."""
    D = layer_params[0][0].shape[0]
    assert D % num_heads == 0, "n_embd must be divisible by num_attn_heads"
    hd = D // num_heads
    scale = 1.0 / math.sqrt(num_heads)   # quirk: sqrt(n_layer), not sqrt(head_dim)

    def split_out(w):   # (D, D) -> (H, D, hd): out-features split per head
        return jnp.transpose(w.reshape(D, num_heads, hd), (1, 0, 2))

    def split_in(w):    # (D, D) -> (H, hd, D): in-features split per head
        return w.reshape(num_heads, hd, D)

    names = ('wq', 'bq', 'wk', 'bk', 'wv', 'bv', 'wo', 'bo', 'g1', 'b1',
             'wi', 'bi', 'wo2', 'bo2', 'g2', 'b2')
    stacks = {n: [] for n in names}
    for (wq, bq, wk, bk, wv, bv, wo, bo, g1, b1,
         wi, bi, wo2, bo2, g2, b2) in layer_params:
        stacks['wq'].append(split_out(wq * scale).astype(weight_dtype))
        stacks['bq'].append((bq * scale).reshape(num_heads, 1, hd).astype(jnp.float32))
        stacks['wk'].append(split_out(wk).astype(weight_dtype))
        stacks['bk'].append(bk.reshape(num_heads, 1, hd).astype(jnp.float32))
        stacks['wv'].append(split_out(wv).astype(weight_dtype))
        stacks['bv'].append(bv.reshape(num_heads, 1, hd).astype(jnp.float32))
        stacks['wo'].append(split_in(wo).astype(weight_dtype))
        stacks['bo'].append(bo.reshape(1, D).astype(jnp.float32))
        stacks['g1'].append(g1.reshape(1, D).astype(jnp.float32))
        stacks['b1'].append(b1.reshape(1, D).astype(jnp.float32))
        stacks['wi'].append(wi.astype(weight_dtype))
        stacks['bi'].append(bi.reshape(1, 4 * D).astype(jnp.float32))
        stacks['wo2'].append(wo2.astype(weight_dtype))
        stacks['bo2'].append(bo2.reshape(1, D).astype(jnp.float32))
        stacks['g2'].append(g2.reshape(1, D).astype(jnp.float32))
        stacks['b2'].append(b2.reshape(1, D).astype(jnp.float32))
    return {n: jnp.stack(v, axis=0) for n, v in stacks.items()}


def syntax_bert_encoder(hidden, mask2d, packed, *, num_heads, ln_eps=1e-12,
                        output_all_encoded_layer=True):
    """Mirrors SyntaxBertEncoder.forward with a single fused pallas_call.

    Returns a list of per-layer encoded states (like the torch module)."""
    B, S, D = hidden.shape
    L = packed['wq'].shape[0]
    hd = D // num_heads

    mask3 = mask2d.reshape(B, 1, S).astype(jnp.float32)   # additive, (B,1,S)

    # grid = (batch b  -> "parallel",  layer l -> "arbitrary" carry axis)
    batch_map = lambda b, l: (b, 0, 0)
    layer3 = lambda b, l: (l, 0, 0)
    layer4 = lambda b, l: (l, 0, 0, 0)

    in_specs = [
        pl.BlockSpec((1, S, D), batch_map),             # hidden
        pl.BlockSpec((1, 1, S), batch_map),             # additive mask
        pl.BlockSpec((1, num_heads, D, hd), layer4),    # wq (head-major, scaled)
        pl.BlockSpec((1, num_heads, 1, hd), layer4),    # bq
        pl.BlockSpec((1, num_heads, D, hd), layer4),    # wk
        pl.BlockSpec((1, num_heads, 1, hd), layer4),    # bk
        pl.BlockSpec((1, num_heads, D, hd), layer4),    # wv
        pl.BlockSpec((1, num_heads, 1, hd), layer4),    # bv
        pl.BlockSpec((1, num_heads, hd, D), layer4),    # wo (head-major)
        pl.BlockSpec((1, 1, D), layer3),                # bo
        pl.BlockSpec((1, 1, D), layer3),                # g1
        pl.BlockSpec((1, 1, D), layer3),                # b1
        pl.BlockSpec((1, D, 4 * D), layer3),            # wi
        pl.BlockSpec((1, 1, 4 * D), layer3),            # bi
        pl.BlockSpec((1, 4 * D, D), layer3),            # wo2
        pl.BlockSpec((1, 1, D), layer3),                # bo2
        pl.BlockSpec((1, 1, D), layer3),                # g2
        pl.BlockSpec((1, 1, D), layer3),                # b2
    ]
    out_spec = pl.BlockSpec((1, 1, S, D), lambda b, l: (l, b, 0, 0))

    # Advisory cost estimate so XLA schedules the call sensibly.
    flops = L * B * (24 * S * D * D + 4 * S * S * D)
    transcendentals = L * B * (num_heads * S * S + 4 * S * D)
    bytes_accessed = (12 * L * D * D * 2            # bf16 weights
                      + L * (16 * D) * 4            # biases / LN params (approx)
                      + B * S * D * 4               # hidden in
                      + L * B * S * D * 4           # all-layer outputs
                      + B * S * 4)                  # mask

    grid_spec = pltpu.PrefetchScalarGridSpec(
        num_scalar_prefetch=0,
        grid=(B, L),
        in_specs=in_specs,
        out_specs=out_spec,
        scratch_shapes=[pltpu.VMEM((S, D), jnp.float32)],   # residual carry
    )

    kernel = functools.partial(_encoder_kernel, num_heads=num_heads, ln_eps=ln_eps)
    order = ('wq', 'bq', 'wk', 'bk', 'wv', 'bv', 'wo', 'bo', 'g1', 'b1',
             'wi', 'bi', 'wo2', 'bo2', 'g2', 'b2')
    all_out = pl.pallas_call(
        kernel,
        out_shape=jax.ShapeDtypeStruct((L, B, S, D), hidden.dtype),
        grid_spec=grid_spec,
        compiler_params=pltpu.CompilerParams(
            dimension_semantics=("parallel", "arbitrary"),
            vmem_limit_bytes=64 * 1024 * 1024,
        ),
        cost_estimate=pl.CostEstimate(flops=flops,
                                      transcendentals=transcendentals,
                                      bytes_accessed=bytes_accessed),
    )(hidden, mask3, *[packed[n] for n in order])

    if output_all_encoded_layer:
        return [all_out[i] for i in range(L)]
    return [all_out[L - 1]]


def init_layer_params(key, D):
    """Deterministic synthetic parameters for one SyntaxBertLayer.
    Weights are stored (in_features, out_features); biases (1, out_features)."""
    ks = jax.random.split(key, 12)

    def lin(kw, kb, din, dout):
        w = jax.random.normal(kw, (din, dout), jnp.float32) * 0.02
        b = jax.random.normal(kb, (1, dout), jnp.float32) * 0.02
        return w, b

    wq, bq = lin(ks[0], ks[1], D, D)
    wk, bk = lin(ks[2], ks[3], D, D)
    wv, bv = lin(ks[4], ks[5], D, D)
    wo, bo = lin(ks[6], ks[7], D, D)
    g1 = jnp.ones((1, D), jnp.float32)
    b1 = jnp.zeros((1, D), jnp.float32)
    wi, bi = lin(ks[8], ks[9], D, 4 * D)
    wo2, bo2 = lin(ks[10], ks[11], 4 * D, D)
    g2 = jnp.ones((1, D), jnp.float32)
    b2 = jnp.zeros((1, D), jnp.float32)
    return (wq, bq, wk, bk, wv, bv, wo, bo, g1, b1,
            wi, bi, wo2, bo2, g2, b2)


def reference_encoder(hidden, mask2d, layer_params, *, num_heads, ln_eps=1e-12):
    """Pure-JAX f32 reference mirroring the torch module exactly."""
    B, S, D = hidden.shape
    hd = D // num_heads
    mask4 = mask2d[:, None, None, :]

    def ln(x, g, b):
        mu = jnp.mean(x, axis=-1, keepdims=True)
        var = jnp.mean((x - mu) ** 2, axis=-1, keepdims=True)
        return (x - mu) / jnp.sqrt(var + ln_eps) * g + b

    def split(x):
        return jnp.transpose(x.reshape(B, S, num_heads, hd), (0, 2, 1, 3))

    outs = []
    h = hidden
    for (wq, bq, wk, bk, wv, bv, wo, bo, g1, b1,
         wi, bi, wo2, bo2, g2, b2) in layer_params:
        q, k, v = h @ wq + bq, h @ wk + bk, h @ wv + bv
        ql, kl, vl = split(q), split(k), split(v)
        s = ql @ jnp.swapaxes(kl, -1, -2) / math.sqrt(num_heads)
        s = s + mask4
        p = jax.nn.softmax(s, axis=-1)
        ctx = jnp.transpose(p @ vl, (0, 2, 1, 3)).reshape(B, S, D)
        attn = ln(ctx @ wo + bo + h, g1, b1)
        inter = jax.nn.gelu(attn @ wi + bi, approximate=False)
        out = ln(inter @ wo2 + bo2 + attn, g2, b2)
        outs.append(out)
        h = out
    return outs


if __name__ == "__main__":
    # Small config consistent with BertConfig: n_embd=32, n_layer=2
    # (num_attn_heads = n_layer = 2, head_size = 32 // 2 = 16).
    B, S, D, n_layer = 2, 8, 32, 2
    num_heads = n_layer   # faithful: SyntaxBertSelfAttention uses config.n_layer

    key = jax.random.PRNGKey(0)
    k_h, k_p = jax.random.split(key, 2)

    hidden = jax.random.normal(k_h, (B, S, D), jnp.float32)

    # Additive attention mask (torch style: 0 valid, -1e9 masked),
    # logically (B, 1, 1, S); passed to the kernel as (B, S).
    valid_len = jnp.array([S, S - 2])
    pos = jnp.arange(S)[None, :]
    mask2d = jnp.where(pos < valid_len[:, None], 0.0, -1e9).astype(jnp.float32)

    layer_params = [init_layer_params(jax.random.fold_in(k_p, i), D)
                    for i in range(n_layer)]
    packed = pack_encoder_params(layer_params, num_heads=num_heads)

    all_layers = syntax_bert_encoder(hidden, mask2d, packed,
                                     num_heads=num_heads,
                                     output_all_encoded_layer=True)
    for o in all_layers:
        jax.block_until_ready(o)
    assert len(all_layers) == n_layer
    assert all_layers[-1].shape == (B, S, D)

    # Correctness vs. a pure-JAX f32 reference (kernel uses bf16 matmul
    # operands + approx softmax reciprocal, hence a loose tolerance).
    refs = reference_encoder(hidden, mask2d, layer_params, num_heads=num_heads)
    for got, ref in zip(all_layers, refs):
        assert jnp.allclose(got, ref, rtol=5e-2, atol=5e-2), \
            float(jnp.max(jnp.abs(got - ref)))

    print("KERNEL_OK")
</pallas_src>

<mosaic_0001>
module attributes {stable_mosaic.version = 11 : i64} {
  func.func @_encoder_kernel(%arg0: i32, %arg1: i32, %arg2: memref<1x8x32xf32, #tpu.memory_space<vmem>>, %arg3: memref<1x1x8xf32, #tpu.memory_space<vmem>>, %arg4: memref<1x2x32x16xbf16, #tpu.memory_space<vmem>>, %arg5: memref<1x2x1x16xf32, #tpu.memory_space<vmem>>, %arg6: memref<1x2x32x16xbf16, #tpu.memory_space<vmem>>, %arg7: memref<1x2x1x16xf32, #tpu.memory_space<vmem>>, %arg8: memref<1x2x32x16xbf16, #tpu.memory_space<vmem>>, %arg9: memref<1x2x1x16xf32, #tpu.memory_space<vmem>>, %arg10: memref<1x2x16x32xbf16, #tpu.memory_space<vmem>>, %arg11: memref<1x1x32xf32, #tpu.memory_space<vmem>>, %arg12: memref<1x1x32xf32, #tpu.memory_space<vmem>>, %arg13: memref<1x1x32xf32, #tpu.memory_space<vmem>>, %arg14: memref<1x32x128xbf16, #tpu.memory_space<vmem>>, %arg15: memref<1x1x128xf32, #tpu.memory_space<vmem>>, %arg16: memref<1x128x32xbf16, #tpu.memory_space<vmem>>, %arg17: memref<1x1x32xf32, #tpu.memory_space<vmem>>, %arg18: memref<1x1x32xf32, #tpu.memory_space<vmem>>, %arg19: memref<1x1x32xf32, #tpu.memory_space<vmem>>, %arg20: memref<1x1x8x32xf32, #tpu.memory_space<vmem>>, %arg21: memref<8x32xf32, #tpu.memory_space<vmem>>) attributes {dimension_semantics = [#tpu.dimension_semantics<parallel>, #tpu.dimension_semantics<arbitrary>], iteration_bounds = array<i64: 2, 2>, scalar_prefetch = 0 : i64, scratch_operands = 1 : i64, tpu.core_type = #tpu.core_type<tc>, window_params = [{transform_indices = @transform_0, window_bounds = array<i64: 1, 8, 32>}, {transform_indices = @transform_1, window_bounds = array<i64: 1, 1, 8>}, {transform_indices = @transform_2, window_bounds = array<i64: 1, 2, 32, 16>}, {transform_indices = @transform_3, window_bounds = array<i64: 1, 2, 1, 16>}, {transform_indices = @transform_4, window_bounds = array<i64: 1, 2, 32, 16>}, {transform_indices = @transform_5, window_bounds = array<i64: 1, 2, 1, 16>}, {transform_indices = @transform_6, window_bounds = array<i64: 1, 2, 32, 16>}, {transform_indices = @transform_7, window_bounds = array<i64: 1, 2, 1, 16>}, {transform_indices = @transform_8, window_bounds = array<i64: 1, 2, 16, 32>}, {transform_indices = @transform_9, window_bounds = array<i64: 1, 1, 32>}, {transform_indices = @transform_10, window_bounds = array<i64: 1, 1, 32>}, {transform_indices = @transform_11, window_bounds = array<i64: 1, 1, 32>}, {transform_indices = @transform_12, window_bounds = array<i64: 1, 32, 128>}, {transform_indices = @transform_13, window_bounds = array<i64: 1, 1, 128>}, {transform_indices = @transform_14, window_bounds = array<i64: 1, 128, 32>}, {transform_indices = @transform_15, window_bounds = array<i64: 1, 1, 32>}, {transform_indices = @transform_16, window_bounds = array<i64: 1, 1, 32>}, {transform_indices = @transform_17, window_bounds = array<i64: 1, 1, 32>}, {transform_indices = @transform_18, window_bounds = array<i64: 1, 1, 8, 32>}]} {
    %c0_i32 = arith.constant 0 : i32
    %0 = arith.cmpi eq, %arg1, %c0_i32 : i32
    %1 = arith.extui %0 : i1 to i32
    %c0_i32_0 = arith.constant 0 : i32
    %2 = arith.cmpi ne, %1, %c0_i32_0 : i32
    scf.if %2 {
      %c0_89 = arith.constant 0 : index
      %c0_90 = arith.constant 0 : index
      %c0_91 = arith.constant 0 : index
      %138 = vector.load %arg2[%c0_89, %c0_90, %c0_91] : memref<1x8x32xf32, #tpu.memory_space<vmem>>, vector<1x8x32xf32>
      %139 = vector.shape_cast %138 : vector<1x8x32xf32> to vector<8x32xf32>
      %c0_92 = arith.constant 0 : index
      %c0_93 = arith.constant 0 : index
      %140 = vector.load %arg21[%c0_92, %c0_93] : memref<8x32xf32, #tpu.memory_space<vmem>>, vector<8x32xf32>
      tpu.vector_store %arg21[%c0_92, %c0_93], %139 {strides = array<i32>} : memref<8x32xf32, #tpu.memory_space<vmem>>, vector<8x32xf32>,
    } else {
    }
    %c0 = arith.constant 0 : index
    %c0_1 = arith.constant 0 : index
    %3 = vector.load %arg21[%c0, %c0_1] : memref<8x32xf32, #tpu.memory_space<vmem>>, vector<8x32xf32>
    %4 = arith.truncf %3 : vector<8x32xf32> to vector<8x32xbf16>
    %5 = vector.shape_cast %4 : vector<8x32xbf16> to vector<1x8x32xbf16>
    %6 = vector.shape_cast %5 : vector<1x8x32xbf16> to vector<1x8x32xbf16>
    %7 = vector.broadcast %6 : vector<1x8x32xbf16> to vector<2x8x32xbf16>
    %c0_2 = arith.constant 0 : index
    %c0_3 = arith.constant 0 : index
    %c0_4 = arith.constant 0 : index
    %8 = vector.load %arg3[%c0_2, %c0_3, %c0_4] : memref<1x1x8xf32, #tpu.memory_space<vmem>>, vector<1x1x8xf32>
    %c0_5 = arith.constant 0 : index
    %c0_6 = arith.constant 0 : index
    %c0_7 = arith.constant 0 : index
    %c0_8 = arith.constant 0 : index
    %9 = vector.load %arg4[%c0_5, %c0_6, %c0_7, %c0_8] : memref<1x2x32x16xbf16, #tpu.memory_space<vmem>>, vector<1x2x32x16xbf16>
    %10 = vector.shape_cast %9 : vector<1x2x32x16xbf16> to vector<2x32x16xbf16>
    "tpu.trace_start"() <{level = 10 : i32, message = "hsd,hde->hse"}> : () -> ()
    %cst = arith.constant dense<0.000000e+00> : vector<2x8x16xf32>
    %11 = tpu.matmul %7, %10, %cst {dimension_numbers = #tpu.dot_dimension_numbers<[2], [1], [1], [2], [0, 0, 0, 1, 1, 2], [0], [0]>} : vector<2x8x32xbf16>, vector<2x32x16xbf16>, vector<2x8x16xf32> -> vector<2x8x16xf32>
    "tpu.trace_stop"() : () -> ()
    %c0_9 = arith.constant 0 : index
    %c0_10 = arith.constant 0 : index
    %c0_11 = arith.constant 0 : index
    %c0_12 = arith.constant 0 : index
    %12 = vector.load %arg5[%c0_9, %c0_10, %c0_11, %c0_12] : memref<1x2x1x16xf32, #tpu.memory_space<vmem>>, vector<1x2x1x16xf32>
    %13 = vector.shape_cast %12 : vector<1x2x1x16xf32> to vector<2x1x16xf32>
    %14 = vector.broadcast %13 : vector<2x1x16xf32> to vector<2x8x16xf32>
    %15 = arith.addf %11, %14 : vector<2x8x16xf32>
    %c0_13 = arith.constant 0 : index
    %c0_14 = arith.constant 0 : index
    %c0_15 = arith.constant 0 : index
    %c0_16 = arith.constant 0 : index
    %16 = vector.load %arg6[%c0_13, %c0_14, %c0_15, %c0_16] : memref<1x2x32x16xbf16, #tpu.memory_space<vmem>>, vector<1x2x32x16xbf16>
    %17 = vector.shape_cast %16 : vector<1x2x32x16xbf16> to vector<2x32x16xbf16>
    "tpu.trace_start"() <{level = 10 : i32, message = "hsd,hde->hse"}> : () -> ()
    %cst_17 = arith.constant dense<0.000000e+00> : vector<2x8x16xf32>
    %18 = tpu.matmul %7, %17, %cst_17 {dimension_numbers = #tpu.dot_dimension_numbers<[2], [1], [1], [2], [0, 0, 0, 1, 1, 2], [0], [0]>} : vector<2x8x32xbf16>, vector<2x32x16xbf16>, vector<2x8x16xf32> -> vector<2x8x16xf32>
    "tpu.trace_stop"() : () -> ()
    %c0_18 = arith.constant 0 : index
    %c0_19 = arith.constant 0 : index
    %c0_20 = arith.constant 0 : index
    %c0_21 = arith.constant 0 : index
    %19 = vector.load %arg7[%c0_18, %c0_19, %c0_20, %c0_21] : memref<1x2x1x16xf32, #tpu.memory_space<vmem>>, vector<1x2x1x16xf32>
    %20 = vector.shape_cast %19 : vector<1x2x1x16xf32> to vector<2x1x16xf32>
    %21 = vector.broadcast %20 : vector<2x1x16xf32> to vector<2x8x16xf32>
    %22 = arith.addf %18, %21 : vector<2x8x16xf32>
    %c0_22 = arith.constant 0 : index
    %c0_23 = arith.constant 0 : index
    %c0_24 = arith.constant 0 : index
    %c0_25 = arith.constant 0 : index
    %23 = vector.load %arg8[%c0_22, %c0_23, %c0_24, %c0_25] : memref<1x2x32x16xbf16, #tpu.memory_space<vmem>>, vector<1x2x32x16xbf16>
    %24 = vector.shape_cast %23 : vector<1x2x32x16xbf16> to vector<2x32x16xbf16>
    "tpu.trace_start"() <{level = 10 : i32, message = "hsd,hde->hse"}> : () -> ()
    %cst_26 = arith.constant dense<0.000000e+00> : vector<2x8x16xf32>
    %25 = tpu.matmul %7, %24, %cst_26 {dimension_numbers = #tpu.dot_dimension_numbers<[2], [1], [1], [2], [0, 0, 0, 1, 1, 2], [0], [0]>} : vector<2x8x32xbf16>, vector<2x32x16xbf16>, vector<2x8x16xf32> -> vector<2x8x16xf32>
    "tpu.trace_stop"() : () -> ()
    %c0_27 = arith.constant 0 : index
    %c0_28 = arith.constant 0 : index
    %c0_29 = arith.constant 0 : index
    %c0_30 = arith.constant 0 : index
    %26 = vector.load %arg9[%c0_27, %c0_28, %c0_29, %c0_30] : memref<1x2x1x16xf32, #tpu.memory_space<vmem>>, vector<1x2x1x16xf32>
    %27 = vector.shape_cast %26 : vector<1x2x1x16xf32> to vector<2x1x16xf32>
    %28 = vector.broadcast %27 : vector<2x1x16xf32> to vector<2x8x16xf32>
    %29 = arith.addf %25, %28 : vector<2x8x16xf32>
    %30 = arith.truncf %15 : vector<2x8x16xf32> to vector<2x8x16xbf16>
    %31 = arith.truncf %22 : vector<2x8x16xf32> to vector<2x8x16xbf16>
    "tpu.trace_start"() <{level = 10 : i32, message = "hqe,hke->hqk"}> : () -> ()
    %cst_31 = arith.constant dense<0.000000e+00> : vector<2x8x8xf32>
    %32 = tpu.matmul %30, %31, %cst_31 {dimension_numbers = #tpu.dot_dimension_numbers<[2], [2], [1], [1], [0, 0, 0, 1, 1, 1], [0], [0]>} : vector<2x8x16xbf16>, vector<2x8x16xbf16>, vector<2x8x8xf32> -> vector<2x8x8xf32>
    "tpu.trace_stop"() : () -> ()
    %33 = vector.broadcast %8 : vector<1x1x8xf32> to vector<2x8x8xf32>
    %34 = arith.addf %32, %33 : vector<2x8x8xf32>
    %cst_32 = arith.constant dense<0xFF800000> : vector<2x8xf32>
    %35 = vector.multi_reduction <maximumf>, %34, %cst_32 [2] : vector<2x8x8xf32> to vector<2x8xf32>
    %36 = vector.shape_cast %35 : vector<2x8xf32> to vector<2x8x1xf32>
    %37 = vector.broadcast %36 : vector<2x8x1xf32> to vector<2x8x8xf32>
    %38 = arith.subf %34, %37 : vector<2x8x8xf32>
    %39 = math.exp %38 : vector<2x8x8xf32>
    %cst_33 = arith.constant dense<0.000000e+00> : vector<2x8xf32>
    %40 = vector.multi_reduction <add>, %39, %cst_33 [2] : vector<2x8x8xf32> to vector<2x8xf32>
    %41 = vector.shape_cast %40 : vector<2x8xf32> to vector<2x8x1xf32>
    %42 = tpu.reciprocal %41 {approx = true} : vector<2x8x1xf32> -> vector<2x8x1xf32>
    %43 = vector.broadcast %42 : vector<2x8x1xf32> to vector<2x8x8xf32>
    %44 = arith.mulf %39, %43 : vector<2x8x8xf32>
    %45 = arith.truncf %44 : vector<2x8x8xf32> to vector<2x8x8xbf16>
    %46 = arith.truncf %29 : vector<2x8x16xf32> to vector<2x8x16xbf16>
    "tpu.trace_start"() <{level = 10 : i32, message = "hqk,hke->hqe"}> : () -> ()
    %cst_34 = arith.constant dense<0.000000e+00> : vector<2x8x16xf32>
    %47 = tpu.matmul %45, %46, %cst_34 {dimension_numbers = #tpu.dot_dimension_numbers<[2], [1], [1], [2], [0, 0, 0, 1, 1, 2], [0], [0]>} : vector<2x8x8xbf16>, vector<2x8x16xbf16>, vector<2x8x16xf32> -> vector<2x8x16xf32>
    "tpu.trace_stop"() : () -> ()
    %48 = arith.truncf %47 : vector<2x8x16xf32> to vector<2x8x16xbf16>
    %c0_35 = arith.constant 0 : index
    %c0_36 = arith.constant 0 : index
    %c0_37 = arith.constant 0 : index
    %c0_38 = arith.constant 0 : index
    %49 = vector.load %arg10[%c0_35, %c0_36, %c0_37, %c0_38] : memref<1x2x16x32xbf16, #tpu.memory_space<vmem>>, vector<1x2x16x32xbf16>
    %50 = vector.shape_cast %49 : vector<1x2x16x32xbf16> to vector<2x16x32xbf16>
    "tpu.trace_start"() <{level = 10 : i32, message = "hse,hed->hsd"}> : () -> ()
    %cst_39 = arith.constant dense<0.000000e+00> : vector<2x8x32xf32>
    %51 = tpu.matmul %48, %50, %cst_39 {dimension_numbers = #tpu.dot_dimension_numbers<[2], [1], [1], [2], [0, 0, 0, 1, 1, 2], [0], [0]>} : vector<2x8x16xbf16>, vector<2x16x32xbf16>, vector<2x8x32xf32> -> vector<2x8x32xf32>
    "tpu.trace_stop"() : () -> ()
    %cst_40 = arith.constant dense<0.000000e+00> : vector<8x32xf32>
    %52 = vector.multi_reduction <add>, %51, %cst_40 [0] : vector<2x8x32xf32> to vector<8x32xf32>
    %c0_41 = arith.constant 0 : index
    %c0_42 = arith.constant 0 : index
    %c0_43 = arith.constant 0 : index
    %53 = vector.load %arg11[%c0_41, %c0_42, %c0_43] : memref<1x1x32xf32, #tpu.memory_space<vmem>>, vector<1x1x32xf32>
    %54 = vector.shape_cast %53 : vector<1x1x32xf32> to vector<1x32xf32>
    %55 = vector.broadcast %54 : vector<1x32xf32> to vector<8x32xf32>
    %56 = arith.addf %52, %55 : vector<8x32xf32>
    %57 = arith.addf %56, %3 : vector<8x32xf32>
    %c0_44 = arith.constant 0 : index
    %c0_45 = arith.constant 0 : index
    %c0_46 = arith.constant 0 : index
    %58 = vector.load %arg12[%c0_44, %c0_45, %c0_46] : memref<1x1x32xf32, #tpu.memory_space<vmem>>, vector<1x1x32xf32>
    %59 = vector.shape_cast %58 : vector<1x1x32xf32> to vector<1x32xf32>
    %c0_47 = arith.constant 0 : index
    %c0_48 = arith.constant 0 : index
    %c0_49 = arith.constant 0 : index
    %60 = vector.load %arg13[%c0_47, %c0_48, %c0_49] : memref<1x1x32xf32, #tpu.memory_space<vmem>>, vector<1x1x32xf32>
    %61 = vector.shape_cast %60 : vector<1x1x32xf32> to vector<1x32xf32>
    %cst_50 = arith.constant dense<0.000000e+00> : vector<8xf32>
    %62 = vector.multi_reduction <add>, %57, %cst_50 [1] : vector<8x32xf32> to vector<8xf32>
    %63 = vector.shape_cast %62 : vector<8xf32> to vector<8x1xf32>
    %cst_51 = arith.constant 3.200000e+01 : f32
    %64 = vector.broadcast %cst_51 : f32 to vector<8x1xf32>
    %65 = arith.divf %63, %64 : vector<8x1xf32>
    %66 = vector.broadcast %65 : vector<8x1xf32> to vector<8x32xf32>
    %67 = arith.subf %57, %66 : vector<8x32xf32>
    %68 = arith.mulf %67, %67 : vector<8x32xf32>
    %cst_52 = arith.constant dense<0.000000e+00> : vector<8xf32>
    %69 = vector.multi_reduction <add>, %68, %cst_52 [1] : vector<8x32xf32> to vector<8xf32>
    %70 = vector.shape_cast %69 : vector<8xf32> to vector<8x1xf32>
    %cst_53 = arith.constant 3.200000e+01 : f32
    %71 = vector.broadcast %cst_53 : f32 to vector<8x1xf32>
    %72 = arith.divf %70, %71 : vector<8x1xf32>
    %73 = vector.broadcast %65 : vector<8x1xf32> to vector<8x32xf32>
    %74 = arith.subf %57, %73 : vector<8x32xf32>
    %cst_54 = arith.constant 9.99999996E-13 : f32
    %75 = vector.broadcast %cst_54 : f32 to vector<8x1xf32>
    %76 = arith.addf %72, %75 : vector<8x1xf32>
    %77 = math.rsqrt %76 : vector<8x1xf32>
    %78 = vector.broadcast %77 : vector<8x1xf32> to vector<8x32xf32>
    %79 = arith.mulf %74, %78 : vector<8x32xf32>
    %80 = vector.broadcast %59 : vector<1x32xf32> to vector<8x32xf32>
    %81 = arith.mulf %79, %80 : vector<8x32xf32>
    %82 = vector.broadcast %61 : vector<1x32xf32> to vector<8x32xf32>
    %83 = arith.addf %81, %82 : vector<8x32xf32>
    %84 = arith.truncf %83 : vector<8x32xf32> to vector<8x32xbf16>
    %c0_55 = arith.constant 0 : index
    %c0_56 = arith.constant 0 : index
    %c0_57 = arith.constant 0 : index
    %85 = vector.load %arg14[%c0_55, %c0_56, %c0_57] : memref<1x32x128xbf16, #tpu.memory_space<vmem>>, vector<1x32x128xbf16>
    %86 = vector.shape_cast %85 : vector<1x32x128xbf16> to vector<32x128xbf16>
    %cst_58 = arith.constant dense<0.000000e+00> : vector<8x128xf32>
    %87 = tpu.matmul %84, %86, %cst_58 {dimension_numbers = #tpu.dot_dimension_numbers<[1], [0], [0], [1], [0, 0, 1, 1], [], []>} : vector<8x32xbf16>, vector<32x128xbf16>, vector<8x128xf32> -> vector<8x128xf32>
    %c0_59 = arith.constant 0 : index
    %c0_60 = arith.constant 0 : index
    %c0_61 = arith.constant 0 : index
    %88 = vector.load %arg15[%c0_59, %c0_60, %c0_61] : memref<1x1x128xf32, #tpu.memory_space<vmem>>, vector<1x1x128xf32>
    %89 = vector.shape_cast %88 : vector<1x1x128xf32> to vector<1x128xf32>
    %90 = vector.broadcast %89 : vector<1x128xf32> to vector<8x128xf32>
    %91 = arith.addf %87, %90 : vector<8x128xf32>
    %cst_62 = arith.constant 5.000000e-01 : f32
    %92 = vector.broadcast %cst_62 : f32 to vector<8x128xf32>
    %93 = arith.mulf %92, %91 : vector<8x128xf32>
    %cst_63 = arith.constant 0.707106769 : f32
    %94 = vector.broadcast %cst_63 : f32 to vector<8x128xf32>
    %95 = arith.mulf %91, %94 : vector<8x128xf32>
    %96 = math.erf %95 : vector<8x128xf32>
    %cst_64 = arith.constant 1.000000e+00 : f32
    %97 = vector.broadcast %cst_64 : f32 to vector<8x128xf32>
    %98 = arith.addf %97, %96 : vector<8x128xf32>
    %99 = arith.mulf %93, %98 : vector<8x128xf32>
    %100 = arith.truncf %99 : vector<8x128xf32> to vector<8x128xbf16>
    %c0_65 = arith.constant 0 : index
    %c0_66 = arith.constant 0 : index
    %c0_67 = arith.constant 0 : index
    %101 = vector.load %arg16[%c0_65, %c0_66, %c0_67] : memref<1x128x32xbf16, #tpu.memory_space<vmem>>, vector<1x128x32xbf16>
    %102 = vector.shape_cast %101 : vector<1x128x32xbf16> to vector<128x32xbf16>
    %cst_68 = arith.constant dense<0.000000e+00> : vector<8x32xf32>
    %103 = tpu.matmul %100, %102, %cst_68 {dimension_numbers = #tpu.dot_dimension_numbers<[1], [0], [0], [1], [0, 0, 1, 1], [], []>} : vector<8x128xbf16>, vector<128x32xbf16>, vector<8x32xf32> -> vector<8x32xf32>
    %c0_69 = arith.constant 0 : index
    %c0_70 = arith.constant 0 : index
    %c0_71 = arith.constant 0 : index
    %104 = vector.load %arg17[%c0_69, %c0_70, %c0_71] : memref<1x1x32xf32, #tpu.memory_space<vmem>>, vector<1x1x32xf32>
    %105 = vector.shape_cast %104 : vector<1x1x32xf32> to vector<1x32xf32>
    %106 = vector.broadcast %105 : vector<1x32xf32> to vector<8x32xf32>
    %107 = arith.addf %103, %106 : vector<8x32xf32>
    %108 = arith.addf %107, %83 : vector<8x32xf32>
    %c0_72 = arith.constant 0 : index
    %c0_73 = arith.constant 0 : index
    %c0_74 = arith.constant 0 : index
    %109 = vector.load %arg18[%c0_72, %c0_73, %c0_74] : memref<1x1x32xf32, #tpu.memory_space<vmem>>, vector<1x1x32xf32>
    %110 = vector.shape_cast %109 : vector<1x1x32xf32> to vector<1x32xf32>
    %c0_75 = arith.constant 0 : index
    %c0_76 = arith.constant 0 : index
    %c0_77 = arith.constant 0 : index
    %111 = vector.load %arg19[%c0_75, %c0_76, %c0_77] : memref<1x1x32xf32, #tpu.memory_space<vmem>>, vector<1x1x32xf32>
    %112 = vector.shape_cast %111 : vector<1x1x32xf32> to vector<1x32xf32>
    %cst_78 = arith.constant dense<0.000000e+00> : vector<8xf32>
    %113 = vector.multi_reduction <add>, %108, %cst_78 [1] : vector<8x32xf32> to vector<8xf32>
    %114 = vector.shape_cast %113 : vector<8xf32> to vector<8x1xf32>
    %cst_79 = arith.constant 3.200000e+01 : f32
    %115 = vector.broadcast %cst_79 : f32 to vector<8x1xf32>
    %116 = arith.divf %114, %115 : vector<8x1xf32>
    %117 = vector.broadcast %116 : vector<8x1xf32> to vector<8x32xf32>
    %118 = arith.subf %108, %117 : vector<8x32xf32>
    %119 = arith.mulf %118, %118 : vector<8x32xf32>
    %cst_80 = arith.constant dense<0.000000e+00> : vector<8xf32>
    %120 = vector.multi_reduction <add>, %119, %cst_80 [1] : vector<8x32xf32> to vector<8xf32>
    %121 = vector.shape_cast %120 : vector<8xf32> to vector<8x1xf32>
    %cst_81 = arith.constant 3.200000e+01 : f32
    %122 = vector.broadcast %cst_81 : f32 to vector<8x1xf32>
    %123 = arith.divf %121, %122 : vector<8x1xf32>
    %124 = vector.broadcast %116 : vector<8x1xf32> to vector<8x32xf32>
    %125 = arith.subf %108, %124 : vector<8x32xf32>
    %cst_82 = arith.constant 9.99999996E-13 : f32
    %126 = vector.broadcast %cst_82 : f32 to vector<8x1xf32>
    %127 = arith.addf %123, %126 : vector<8x1xf32>
    %128 = math.rsqrt %127 : vector<8x1xf32>
    %129 = vector.broadcast %128 : vector<8x1xf32> to vector<8x32xf32>
    %130 = arith.mulf %125, %129 : vector<8x32xf32>
    %131 = vector.broadcast %110 : vector<1x32xf32> to vector<8x32xf32>
    %132 = arith.mulf %130, %131 : vector<8x32xf32>
    %133 = vector.broadcast %112 : vector<1x32xf32> to vector<8x32xf32>
    %134 = arith.addf %132, %133 : vector<8x32xf32>
    %c0_83 = arith.constant 0 : index
    %c0_84 = arith.constant 0 : index
    %135 = vector.load %arg21[%c0_83, %c0_84] : memref<8x32xf32, #tpu.memory_space<vmem>>, vector<8x32xf32>
    tpu.vector_store %arg21[%c0_83, %c0_84], %134 {strides = array<i32>} : memref<8x32xf32, #tpu.memory_space<vmem>>, vector<8x32xf32>,
    %136 = vector.shape_cast %134 : vector<8x32xf32> to vector<1x1x8x32xf32>
    %c0_85 = arith.constant 0 : index
    %c0_86 = arith.constant 0 : index
    %c0_87 = arith.constant 0 : index
    %c0_88 = arith.constant 0 : index
    %137 = vector.load %arg20[%c0_85, %c0_86, %c0_87, %c0_88] : memref<1x1x8x32xf32, #tpu.memory_space<vmem>>, vector<1x1x8x32xf32>
    tpu.vector_store %arg20[%c0_85, %c0_86, %c0_87, %c0_88], %136 {strides = array<i32>} : memref<1x1x8x32xf32, #tpu.memory_space<vmem>>, vector<1x1x8x32xf32>,
    return
  }
  func.func @transform_0(%arg0: i32, %arg1: i32) -> (i32, i32, i32) {
    %c0_i32 = arith.constant 0 : i32
    %c0_i32_0 = arith.constant 0 : i32
    %c0_i32_1 = arith.constant 0 : i32
    return %arg0, %c0_i32, %c0_i32_0 : i32, i32, i32
  }
  func.func @transform_1(%arg0: i32, %arg1: i32) -> (i32, i32, i32) {
    %c0_i32 = arith.constant 0 : i32
    %c0_i32_0 = arith.constant 0 : i32
    %c0_i32_1 = arith.constant 0 : i32
    return %arg0, %c0_i32, %c0_i32_0 : i32, i32, i32
  }
  func.func @transform_2(%arg0: i32, %arg1: i32) -> (i32, i32, i32, i32) {
    %c0_i32 = arith.constant 0 : i32
    %c0_i32_0 = arith.constant 0 : i32
    %c0_i32_1 = arith.constant 0 : i32
    %c0_i32_2 = arith.constant 0 : i32
    return %arg1, %c0_i32, %c0_i32_0, %c0_i32_1 : i32, i32, i32, i32
  }
  func.func @transform_3(%arg0: i32, %arg1: i32) -> (i32, i32, i32, i32) {
    %c0_i32 = arith.constant 0 : i32
    %c0_i32_0 = arith.constant 0 : i32
    %c0_i32_1 = arith.constant 0 : i32
    %c0_i32_2 = arith.constant 0 : i32
    return %arg1, %c0_i32, %c0_i32_0, %c0_i32_1 : i32, i32, i32, i32
  }
  func.func @transform_4(%arg0: i32, %arg1: i32) -> (i32, i32, i32, i32) {
    %c0_i32 = arith.constant 0 : i32
    %c0_i32_0 = arith.constant 0 : i32
    %c0_i32_1 = arith.constant 0 : i32
    %c0_i32_2 = arith.constant 0 : i32
    return %arg1, %c0_i32, %c0_i32_0, %c0_i32_1 : i32, i32, i32, i32
  }
  func.func @transform_5(%arg0: i32, %arg1: i32) -> (i32, i32, i32, i32) {
    %c0_i32 = arith.constant 0 : i32
    %c0_i32_0 = arith.constant 0 : i32
    %c0_i32_1 = arith.constant 0 : i32
    %c0_i32_2 = arith.constant 0 : i32
    return %arg1, %c0_i32, %c0_i32_0, %c0_i32_1 : i32, i32, i32, i32
  }
  func.func @transform_6(%arg0: i32, %arg1: i32) -> (i32, i32, i32, i32) {
    %c0_i32 = arith.constant 0 : i32
    %c0_i32_0 = arith.constant 0 : i32
    %c0_i32_1 = arith.constant 0 : i32
    %c0_i32_2 = arith.constant 0 : i32
    return %arg1, %c0_i32, %c0_i32_0, %c0_i32_1 : i32, i32, i32, i32
  }
  func.func @transform_7(%arg0: i32, %arg1: i32) -> (i32, i32, i32, i32) {
    %c0_i32 = arith.constant 0 : i32
    %c0_i32_0 = arith.constant 0 : i32
    %c0_i32_1 = arith.constant 0 : i32
    %c0_i32_2 = arith.constant 0 : i32
    return %arg1, %c0_i32, %c0_i32_0, %c0_i32_1 : i32, i32, i32, i32
  }
  func.func @transform_8(%arg0: i32, %arg1: i32) -> (i32, i32, i32, i32) {
    %c0_i32 = arith.constant 0 : i32
    %c0_i32_0 = arith.constant 0 : i32
    %c0_i32_1 = arith.constant 0 : i32
    %c0_i32_2 = arith.constant 0 : i32
    return %arg1, %c0_i32, %c0_i32_0, %c0_i32_1 : i32, i32, i32, i32
  }
  func.func @transform_9(%arg0: i32, %arg1: i32) -> (i32, i32, i32) {
    %c0_i32 = arith.constant 0 : i32
    %c0_i32_0 = arith.constant 0 : i32
    %c0_i32_1 = arith.constant 0 : i32
    return %arg1, %c0_i32, %c0_i32_0 : i32, i32, i32
  }
  func.func @transform_10(%arg0: i32, %arg1: i32) -> (i32, i32, i32) {
    %c0_i32 = arith.constant 0 : i32
    %c0_i32_0 = arith.constant 0 : i32
    %c0_i32_1 = arith.constant 0 : i32
    return %arg1, %c0_i32, %c0_i32_0 : i32, i32, i32
  }
  func.func @transform_11(%arg0: i32, %arg1: i32) -> (i32, i32, i32) {
    %c0_i32 = arith.constant 0 : i32
    %c0_i32_0 = arith.constant 0 : i32
    %c0_i32_1 = arith.constant 0 : i32
    return %arg1, %c0_i32, %c0_i32_0 : i32, i32, i32
  }
  func.func @transform_12(%arg0: i32, %arg1: i32) -> (i32, i32, i32) {
    %c0_i32 = arith.constant 0 : i32
    %c0_i32_0 = arith.constant 0 : i32
    %c0_i32_1 = arith.constant 0 : i32
    return %arg1, %c0_i32, %c0_i32_0 : i32, i32, i32
  }
  func.func @transform_13(%arg0: i32, %arg1: i32) -> (i32, i32, i32) {
    %c0_i32 = arith.constant 0 : i32
    %c0_i32_0 = arith.constant 0 : i32
    %c0_i32_1 = arith.constant 0 : i32
    return %arg1, %c0_i32, %c0_i32_0 : i32, i32, i32
  }
  func.func @transform_14(%arg0: i32, %arg1: i32) -> (i32, i32, i32) {
    %c0_i32 = arith.constant 0 : i32
    %c0_i32_0 = arith.constant 0 : i32
    %c0_i32_1 = arith.constant 0 : i32
    return %arg1, %c0_i32, %c0_i32_0 : i32, i32, i32
  }
  func.func @transform_15(%arg0: i32, %arg1: i32) -> (i32, i32, i32) {
    %c0_i32 = arith.constant 0 : i32
    %c0_i32_0 = arith.constant 0 : i32
    %c0_i32_1 = arith.constant 0 : i32
    return %arg1, %c0_i32, %c0_i32_0 : i32, i32, i32
  }
  func.func @transform_16(%arg0: i32, %arg1: i32) -> (i32, i32, i32) {
    %c0_i32 = arith.constant 0 : i32
    %c0_i32_0 = arith.constant 0 : i32
    %c0_i32_1 = arith.constant 0 : i32
    return %arg1, %c0_i32, %c0_i32_0 : i32, i32, i32
  }
  func.func @transform_17(%arg0: i32, %arg1: i32) -> (i32, i32, i32) {
    %c0_i32 = arith.constant 0 : i32
    %c0_i32_0 = arith.constant 0 : i32
    %c0_i32_1 = arith.constant 0 : i32
    return %arg1, %c0_i32, %c0_i32_0 : i32, i32, i32
  }
  func.func @transform_18(%arg0: i32, %arg1: i32) -> (i32, i32, i32, i32) {
    %c0_i32 = arith.constant 0 : i32
    %c0_i32_0 = arith.constant 0 : i32
    %c0_i32_1 = arith.constant 0 : i32
    return %arg1, %arg0, %c0_i32, %c0_i32_0 : i32, i32, i32, i32
  }
}

</mosaic_0001>

<llo_original>
// kernel: tpu_custom_call.1
$region0: #{tpu_custom_call.1}
  #allocation0 [shape = 'u32[]', space=smem, size = 0x4, offset = 0x4, fixed_abs, tag = 'smem constant byte address 0x4 - core index']
  #allocation1 [shape = 'u32[144,128]{1,0:T(1,128)}', space=vmem, size = 0x12000, scoped, tag = 'internal scratch']
  #allocation2 [shape = 'f32[8,32]{1,0:T(8,128)}', space=vmem, size = 0x1000, scoped, tag = 'scratch operand']
  %s0 = inlined_call_operand.hbm [shape: f32[2,8,32], index: 0, kind: input, shape index: {}]
  %s1 = inlined_call_operand.hbm [shape: f32[2,1,8], index: 1, kind: input, shape index: {}]
  %s2 = inlined_call_operand.hbm [shape: bf16[2,2,32,16], index: 2, kind: input, shape index: {}]
  %s3 = inlined_call_operand.hbm [shape: f32[2,2,1,16], index: 3, kind: input, shape index: {}]
  %s4 = inlined_call_operand.hbm [shape: bf16[2,2,32,16], index: 4, kind: input, shape index: {}]
  %s5 = inlined_call_operand.hbm [shape: f32[2,2,1,16], index: 5, kind: input, shape index: {}]
  %s6 = inlined_call_operand.hbm [shape: bf16[2,2,32,16], index: 6, kind: input, shape index: {}]
  %s7 = inlined_call_operand.hbm [shape: f32[2,2,1,16], index: 7, kind: input, shape index: {}]
  %s8 = inlined_call_operand.hbm [shape: bf16[2,2,16,32], index: 8, kind: input, shape index: {}]
  %s9 = inlined_call_operand.hbm [shape: f32[2,1,32], index: 9, kind: input, shape index: {}]
  %s10 = inlined_call_operand.hbm [shape: f32[2,1,32], index: 10, kind: input, shape index: {}]
  %s11 = inlined_call_operand.hbm [shape: f32[2,1,32], index: 11, kind: input, shape index: {}]
  %s12 = inlined_call_operand.hbm [shape: bf16[2,32,128], index: 12, kind: input, shape index: {}]
  %s13 = inlined_call_operand.hbm [shape: f32[2,1,128], index: 13, kind: input, shape index: {}]
  %s14 = inlined_call_operand.hbm [shape: bf16[2,128,32], index: 14, kind: input, shape index: {}]
  %s15 = inlined_call_operand.hbm [shape: f32[2,1,32], index: 15, kind: input, shape index: {}]
  %s16 = inlined_call_operand.hbm [shape: f32[2,1,32], index: 16, kind: input, shape index: {}]
  %s17 = inlined_call_operand.hbm [shape: f32[2,1,32], index: 17, kind: input, shape index: {}]
  %s18 = inlined_call_operand.hbm [shape: f32[2,2,8,32], index: 18, kind: output, shape index: {}]
  %s19 = sld [smem:[#allocation0]]
  $region181: #{tpu_custom_call.1} parent=0
    _
  %s21 = ssub.s32 1, %s19
  %s22 = scalar_select 0, %s21, %s19
  $region1: #{tpu_custom_call.1} parent=0
    #allocation3 [shape = 'u8[8192]{0}', space=vmem, size = 0x2000, scoped, tag = 'input window, operand 0']
    #allocation4 [shape = 's32[2]{0}', space=sflag, size = 0x8, scoped, tag = 'scoped memory for tpu_custom_call.1']
    #allocation5 [shape = 's32[2]{0}', space=sflag, size = 0x8, scoped, tag = 'scoped memory for tpu_custom_call.1']
    #allocation6 [shape = 'u8[1024]{0}', space=vmem, size = 0x400, scoped, tag = 'input window, operand 1']
    #allocation7 [shape = 's32[2]{0}', space=sflag, size = 0x8, scoped, tag = 'scoped memory for tpu_custom_call.1']
    #allocation8 [shape = 'u8[32768]{0}', space=vmem, size = 0x8000, scoped, tag = 'input window, operand 2']
    #allocation9 [shape = 'u8[2048]{0}', space=vmem, size = 0x800, scoped, tag = 'input window, operand 3']
    #allocation10 [shape = 's32[2]{0}', space=sflag, size = 0x8, scoped, tag = 'scoped memory for tpu_custom_call.1']
    #allocation11 [shape = 'u8[32768]{0}', space=vmem, size = 0x8000, scoped, tag = 'input window, operand 4']
    #allocation12 [shape = 'u8[2048]{0}', space=vmem, size = 0x800, scoped, tag = 'input window, operand 5']
    #allocation13 [shape = 's32[2]{0}', space=sflag, size = 0x8, scoped, tag = 'scoped memory for tpu_custom_call.1']
    #allocation14 [shape = 'u8[32768]{0}', space=vmem, size = 0x8000, scoped, tag = 'input window, operand 6']
    #allocation15 [shape = 'u8[2048]{0}', space=vmem, size = 0x800, scoped, tag = 'input window, operand 7']
    #allocation16 [shape = 's32[2]{0}', space=sflag, size = 0x8, scoped, tag = 'scoped memory for tpu_custom_call.1']
    #allocation17 [shape = 'u8[16384]{0}', space=vmem, size = 0x4000, scoped, tag = 'input window, operand 8']
    #allocation18 [shape = 'u8[1024]{0}', space=vmem, size = 0x400, scoped, tag = 'input window, operand 9']
    #allocation19 [shape = 's32[2]{0}', space=sflag, size = 0x8, scoped, tag = 'scoped memory for tpu_custom_call.1']
    #allocation20 [shape = 'u8[1024]{0}', space=vmem, size = 0x400, scoped, tag = 'input window, operand 10']
    #allocation21 [shape = 'u8[1024]{0}', space=vmem, size = 0x400, scoped, tag = 'input window, operand 11']
    #allocation22 [shape = 's32[2]{0}', space=sflag, size = 0x8, scoped, tag = 'scoped memory for tpu_custom_call.1']
    #allocation23 [shape = 'u8[16384]{0}', space=vmem, size = 0x4000, scoped, tag = 'input window, operand 12']
    #allocation24 [shape = 'u8[1024]{0}', space=vmem, size = 0x400, scoped, tag = 'input window, operand 13']
    #allocation25 [shape = 's32[2]{0}', space=sflag, size = 0x8, scoped, tag = 'scoped memory for tpu_custom_call.1']
    #allocation26 [shape = 'u8[65536]{0}', space=vmem, size = 0x10000, scoped, tag = 'input window, operand 14']
    #allocation27 [shape = 'u8[1024]{0}', space=vmem, size = 0x400, scoped, tag = 'input window, operand 15']
    #allocation28 [shape = 's32[2]{0}', space=sflag, size = 0x8, scoped, tag = 'scoped memory for tpu_custom_call.1']
    #allocation29 [shape = 'u8[1024]{0}', space=vmem, size = 0x400, scoped, tag = 'input window, operand 16']
    #allocation30 [shape = 'u8[1024]{0}', space=vmem, size = 0x400, scoped, tag = 'input window, operand 17']
    #allocation31 [shape = 's32[2]{0}', space=sflag, size = 0x8, scoped, tag = 'scoped memory for tpu_custom_call.1']
    #allocation32 [shape = 'u8[8192]{0}', space=vmem, size = 0x2000, scoped, tag = 'output window, operand 0']
    %23 = vsyncpa [#allocation4], 0
    %s24 = scalar_lea.sflag [#allocation4], 1
    %25 = vsyncpa %s24, 0
    %26 = vsyncpa [#allocation7], 0
    %s27 = scalar_lea.sflag [#allocation7], 1
    %28 = vsyncpa %s27, 0
    %29 = vsyncpa [#allocation10], 0
    %s30 = scalar_lea.sflag [#allocation10], 1
    %31 = vsyncpa %s30, 0
    %32 = vsyncpa [#allocation13], 0
    %s33 = scalar_lea.sflag [#allocation13], 1
    %34 = vsyncpa %s33, 0
    %35 = vsyncpa [#allocation16], 0
    %s36 = scalar_lea.sflag [#allocation16], 1
    %37 = vsyncpa %s36, 0
    %38 = vsyncpa [#allocation19], 0
    %s39 = scalar_lea.sflag [#allocation19], 1
    %40 = vsyncpa %s39, 0
    %41 = vsyncpa [#allocation22], 0
    %s42 = scalar_lea.sflag [#allocation22], 1
    %43 = vsyncpa %s42, 0
    %44 = vsyncpa [#allocation25], 0
    %s45 = scalar_lea.sflag [#allocation25], 1
    %46 = vsyncpa %s45, 0
    %47 = vsyncpa [#allocation28], 0
    %s48 = scalar_lea.sflag [#allocation28], 1
    %49 = vsyncpa %s48, 0
    %50 = vsyncpa [#allocation31], 0
    %s51 = scalar_lea.sflag [#allocation31], 1
    %52 = vsyncpa %s51, 0
    %53 = vsyncpa [#allocation5], 0
    %s54 = scalar_lea.sflag [#allocation5], 1
    %55 = vsyncpa %s54, 0
    loop: start=0, step=1, limit=6
    $region2: #{tpu_custom_call.1} parent=1 // loop_pre_header
      _
    $region3: #{tpu_custom_call.1} parent=1 // loop_header
      %s57 = sphi 0, %s61
      %p58 = scmp.ge.s32.totalorder %s57, 6
      %s64 = sphi 0, %s76
      %s65 = sphi 0, %s72
      %s66 = sphi 0, %s64
      %s67 = sphi 0, %s65
      %s68 = sphi 0, %s66
      %s69 = sphi 0, %s67
      %s79 = sphi 0, %s81
      %s82 = sphi 0, %s79
      %s83 = sphi 0, %s82
      %s99 = sphi 0, %s83
      %s105 = sphi 0, %s107
      %s108 = sphi 0, %s105
      %s109 = sphi 0, %s108
      %s125 = sphi 0, %s109
      %s131 = sphi 0, %s133
      %s134 = sphi 0, %s131
      %s135 = sphi 0, %s134
      %s151 = sphi 0, %s135
      %s157 = sphi 0, %s159
      %s160 = sphi 0, %s157
      %s161 = sphi 0, %s160
      %s177 = sphi 0, %s161
      %s183 = sphi 0, %s185
      %s186 = sphi 0, %s183
      %s187 = sphi 0, %s186
      %s203 = sphi 0, %s187
      %s209 = sphi 0, %s211
      %s212 = sphi 0, %s209
      %s213 = sphi 0, %s212
      %s229 = sphi 0, %s213
      %s235 = sphi 0, %s237
      %s238 = sphi 0, %s235
      %s239 = sphi 0, %s238
      %s255 = sphi 0, %s239
      %s261 = sphi 0, %s263
      %s264 = sphi 0, %s261
      %s265 = sphi 0, %s264
      %s281 = sphi 0, %s265
      %s287 = sphi 0, %s289
      %s290 = sphi 0, %s287
      %s291 = sphi 0, %s290
      %s307 = sphi 0, %s291
      %s313 = sphi 0, %s315
      %s316 = sphi 0, %s313
      %s317 = sphi 0, %s316
      %s333 = sphi 0, %s317
      %s339 = sphi 0, %s341
      %s342 = sphi 0, %s339
      %s343 = sphi 0, %s342
      %s359 = sphi 0, %s343
      %s365 = sphi 0, %s367
      %s368 = sphi 0, %s365
      %s369 = sphi 0, %s368
      %s385 = sphi 0, %s369
      %s391 = sphi 0, %s393
      %s394 = sphi 0, %s391
      %s395 = sphi 0, %s394
      %s411 = sphi 0, %s395
      %s417 = sphi 0, %s419
      %s420 = sphi 0, %s417
      %s421 = sphi 0, %s420
      %s437 = sphi 0, %s421
      %s443 = sphi 0, %s445
      %s446 = sphi 0, %s443
      %s447 = sphi 0, %s446
      %s463 = sphi 0, %s447
      %s469 = sphi 0, %s471
      %s472 = sphi 0, %s469
      %s473 = sphi 0, %s472
      %s489 = sphi 0, %s473
      %s495 = sphi 0, %s497
      %s498 = sphi 0, %s495
      %s499 = sphi 0, %s498
      %s515 = sphi 0, %s499
      %s521 = sphi 0, %s523
      %s524 = sphi 0, %s521
      %s525 = sphi 0, %s524
      %s541 = sphi 0, %s525
      %s549 = sphi 0, %s551
      %s552 = sphi 0, %s549
      %s553 = sphi 0, %s552
      %s569 = sphi 0, %s553
    $region4: #{tpu_custom_call.1} parent=1 // loop_header_branch
      %60 = sbr.rel (%p58) target = $region8
    $region5: #{tpu_custom_call.1} parent=1 // loop_body
      %s62 = ssub.s32 %s57, 1
      %s63 = ssub.s32 %s57, 2
      %s70 = sadd.s32 1, %s65
      %p71 = scmp.ge.s32.totalorder %s70, 2
      %s72 = scalar_select %p71, 0, %s70
      %s73 = sadd.s32 1, %s64
      %s74 = scalar_select %p71, %s73, %s64
      %p75 = scmp.ge.s32.totalorder %s74, 2
      %s76 = scalar_select %p75, 0, %s74
      %s77 = ssub.s32 %s64, %s76
      %p78 = scmp.eq.s32.totalorder %s77, 0
      %s80 = sadd.s32 %s79, 1
      %s81 = scalar_select %p78, %s79, %s80
      %p84 = pneg %p78
      %p85 = scmp.eq.s32.totalorder %s57, 3
      %p86 = por %p84, %p85
      %p87 = scmp.ne.s32.totalorder %s79, %s82
      %p88 = scmp.eq.s32.totalorder %s57, 0
      %p89 = por %p87, %p88
      %p90 = scmp.ne.s32.totalorder %s79, %s82
      %p91 = scmp.eq.s32.totalorder %s62, 3
      %p92 = por %p90, %p91
      %p93 = scmp.ne.s32.totalorder %s82, %s83
      %p94 = scmp.eq.s32.totalorder %s62, 0
      %p95 = por %p93, %p94
      %p96 = scmp.ne.s32.totalorder %s82, %s83
      %p97 = scmp.eq.s32.totalorder %s63, 3
      %p98 = por %p96, %p97
      %p100 = scmp.ne.s32.totalorder %s83, %s99
      %p101 = scmp.eq.s32.totalorder %s63, 0
      %p102 = por %p100, %p101
      %s103 = ssub.s32 %s64, %s76
      %p104 = scmp.eq.s32.totalorder %s103, 0
      %s106 = sadd.s32 %s105, 1
      %s107 = scalar_select %p104, %s105, %s106
      %p110 = pneg %p104
      %p111 = scmp.eq.s32.totalorder %s57, 3
      %p112 = por %p110, %p111
      %p113 = scmp.ne.s32.totalorder %s105, %s108
      %p114 = scmp.eq.s32.totalorder %s57, 0
      %p115 = por %p113, %p114
      %p116 = scmp.ne.s32.totalorder %s105, %s108
      %p117 = scmp.eq.s32.totalorder %s62, 3
      %p118 = por %p116, %p117
      %p119 = scmp.ne.s32.totalorder %s108, %s109
      %p120 = scmp.eq.s32.totalorder %s62, 0
      %p121 = por %p119, %p120
      %p122 = scmp.ne.s32.totalorder %s108, %s109
      %p123 = scmp.eq.s32.totalorder %s63, 3
      %p124 = por %p122, %p123
      %p126 = scmp.ne.s32.totalorder %s109, %s125
      %p127 = scmp.eq.s32.totalorder %s63, 0
      %p128 = por %p126, %p127
      %s129 = ssub.s32 %s65, %s72
      %p130 = scmp.eq.s32.totalorder %s129, 0
      %s132 = sadd.s32 %s131, 1
      %s133 = scalar_select %p130, %s131, %s132
      %p136 = pneg %p130
      %p137 = scmp.eq.s32.totalorder %s57, 3
      %p138 = por %p136, %p137
      %p139 = scmp.ne.s32.totalorder %s131, %s134
      %p140 = scmp.eq.s32.totalorder %s57, 0
      %p141 = por %p139, %p140
      %p142 = scmp.ne.s32.totalorder %s131, %s134
      %p143 = scmp.eq.s32.totalorder %s62, 3
      %p144 = por %p142, %p143
      %p145 = scmp.ne.s32.totalorder %s134, %s135
      %p146 = scmp.eq.s32.totalorder %s62, 0
      %p147 = por %p145, %p146
      %p148 = scmp.ne.s32.totalorder %s134, %s135
      %p149 = scmp.eq.s32.totalorder %s63, 3
      %p150 = por %p148, %p149
      %p152 = scmp.ne.s32.totalorder %s135, %s151
      %p153 = scmp.eq.s32.totalorder %s63, 0
      %p154 = por %p152, %p153
      %s155 = ssub.s32 %s65, %s72
      %p156 = scmp.eq.s32.totalorder %s155, 0
      %s158 = sadd.s32 %s157, 1
      %s159 = scalar_select %p156, %s157, %s158
      %p162 = pneg %p156
      %p163 = scmp.eq.s32.totalorder %s57, 3
      %p164 = por %p162, %p163
      %p165 = scmp.ne.s32.totalorder %s157, %s160
      %p166 = scmp.eq.s32.totalorder %s57, 0
      %p167 = por %p165, %p166
      %p168 = scmp.ne.s32.totalorder %s157, %s160
      %p169 = scmp.eq.s32.totalorder %s62, 3
      %p170 = por %p168, %p169
      %p171 = scmp.ne.s32.totalorder %s160, %s161
      %p172 = scmp.eq.s32.totalorder %s62, 0
      %p173 = por %p171, %p172
      %p174 = scmp.ne.s32.totalorder %s160, %s161
      %p175 = scmp.eq.s32.totalorder %s63, 3
      %p176 = por %p174, %p175
      %p178 = scmp.ne.s32.totalorder %s161, %s177
      %p179 = scmp.eq.s32.totalorder %s63, 0
      %p180 = por %p178, %p179
      %s181 = ssub.s32 %s65, %s72
      %p182 = scmp.eq.s32.totalorder %s181, 0
      %s184 = sadd.s32 %s183, 1
      %s185 = scalar_select %p182, %s183, %s184
      %p188 = pneg %p182
      %p189 = scmp.eq.s32.totalorder %s57, 3
      %p190 = por %p188, %p189
      %p191 = scmp.ne.s32.totalorder %s183, %s186
      %p192 = scmp.eq.s32.totalorder %s57, 0
      %p193 = por %p191, %p192
      %p194 = scmp.ne.s32.totalorder %s183, %s186
      %p195 = scmp.eq.s32.totalorder %s62, 3
      %p196 = por %p194, %p195
      %p197 = scmp.ne.s32.totalorder %s186, %s187
      %p198 = scmp.eq.s32.totalorder %s62, 0
      %p199 = por %p197, %p198
      %p200 = scmp.ne.s32.totalorder %s186, %s187
      %p201 = scmp.eq.s32.totalorder %s63, 3
      %p202 = por %p200, %p201
      %p204 = scmp.ne.s32.totalorder %s187, %s203
      %p205 = scmp.eq.s32.totalorder %s63, 0
      %p206 = por %p204, %p205
      %s207 = ssub.s32 %s65, %s72
      %p208 = scmp.eq.s32.totalorder %s207, 0
      %s210 = sadd.s32 %s209, 1
      %s211 = scalar_select %p208, %s209, %s210
      %p214 = pneg %p208
      %p215 = scmp.eq.s32.totalorder %s57, 3
      %p216 = por %p214, %p215
      %p217 = scmp.ne.s32.totalorder %s209, %s212
      %p218 = scmp.eq.s32.totalorder %s57, 0
      %p219 = por %p217, %p218
      %p220 = scmp.ne.s32.totalorder %s209, %s212
      %p221 = scmp.eq.s32.totalorder %s62, 3
      %p222 = por %p220, %p221
      %p223 = scmp.ne.s32.totalorder %s212, %s213
      %p224 = scmp.eq.s32.totalorder %s62, 0
      %p225 = por %p223, %p224
      %p226 = scmp.ne.s32.totalorder %s212, %s213
      %p227 = scmp.eq.s32.totalorder %s63, 3
      %p228 = por %p226, %p227
      %p230 = scmp.ne.s32.totalorder %s213, %s229
      %p231 = scmp.eq.s32.totalorder %s63, 0
      %p232 = por %p230, %p231
      %s233 = ssub.s32 %s65, %s72
      %p234 = scmp.eq.s32.totalorder %s233, 0
      %s236 = sadd.s32 %s235, 1
      %s237 = scalar_select %p234, %s235, %s236
      %p240 = pneg %p234
      %p241 = scmp.eq.s32.totalorder %s57, 3
      %p242 = por %p240, %p241
      %p243 = scmp.ne.s32.totalorder %s235, %s238
      %p244 = scmp.eq.s32.totalorder %s57, 0
      %p245 = por %p243, %p244
      %p246 = scmp.ne.s32.totalorder %s235, %s238
      %p247 = scmp.eq.s32.totalorder %s62, 3
      %p248 = por %p246, %p247
      %p249 = scmp.ne.s32.totalorder %s238, %s239
      %p250 = scmp.eq.s32.totalorder %s62, 0
      %p251 = por %p249, %p250
      %p252 = scmp.ne.s32.totalorder %s238, %s239
      %p253 = scmp.eq.s32.totalorder %s63, 3
      %p254 = por %p252, %p253
      %p256 = scmp.ne.s32.totalorder %s239, %s255
      %p257 = scmp.eq.s32.totalorder %s63, 0
      %p258 = por %p256, %p257
      %s259 = ssub.s32 %s65, %s72
      %p260 = scmp.eq.s32.totalorder %s259, 0
      %s262 = sadd.s32 %s261, 1
      %s263 = scalar_select %p260, %s261, %s262
      %p266 = pneg %p260
      %p267 = scmp.eq.s32.totalorder %s57, 3
      %p268 = por %p266, %p267
      %p269 = scmp.ne.s32.totalorder %s261, %s264
      %p270 = scmp.eq.s32.totalorder %s57, 0
      %p271 = por %p269, %p270
      %p272 = scmp.ne.s32.totalorder %s261, %s264
      %p273 = scmp.eq.s32.totalorder %s62, 3
      %p274 = por %p272, %p273
      %p275 = scmp.ne.s32.totalorder %s264, %s265
      %p276 = scmp.eq.s32.totalorder %s62, 0
      %p277 = por %p275, %p276
      %p278 = scmp.ne.s32.totalorder %s264, %s265
      %p279 = scmp.eq.s32.totalorder %s63, 3
      %p280 = por %p278, %p279
      %p282 = scmp.ne.s32.totalorder %s265, %s281
      %p283 = scmp.eq.s32.totalorder %s63, 0
      %p284 = por %p282, %p283
      %s285 = ssub.s32 %s65, %s72
      %p286 = scmp.eq.s32.totalorder %s285, 0
      %s288 = sadd.s32 %s287, 1
      %s289 = scalar_select %p286, %s287, %s288
      %p292 = pneg %p286
      %p293 = scmp.eq.s32.totalorder %s57, 3
      %p294 = por %p292, %p293
      %p295 = scmp.ne.s32.totalorder %s287, %s290
      %p296 = scmp.eq.s32.totalorder %s57, 0
      %p297 = por %p295, %p296
      %p298 = scmp.ne.s32.totalorder %s287, %s290
      %p299 = scmp.eq.s32.totalorder %s62, 3
      %p300 = por %p298, %p299
      %p301 = scmp.ne.s32.totalorder %s290, %s291
      %p302 = scmp.eq.s32.totalorder %s62, 0
      %p303 = por %p301, %p302
      %p304 = scmp.ne.s32.totalorder %s290, %s291
      %p305 = scmp.eq.s32.totalorder %s63, 3
      %p306 = por %p304, %p305
      %p308 = scmp.ne.s32.totalorder %s291, %s307
      %p309 = scmp.eq.s32.totalorder %s63, 0
      %p310 = por %p308, %p309
      %s311 = ssub.s32 %s65, %s72
      %p312 = scmp.eq.s32.totalorder %s311, 0
      %s314 = sadd.s32 %s313, 1
      %s315 = scalar_select %p312, %s313, %s314
      %p318 = pneg %p312
      %p319 = scmp.eq.s32.totalorder %s57, 3
      %p320 = por %p318, %p319
      %p321 = scmp.ne.s32.totalorder %s313, %s316
      %p322 = scmp.eq.s32.totalorder %s57, 0
      %p323 = por %p321, %p322
      %p324 = scmp.ne.s32.totalorder %s313, %s316
      %p325 = scmp.eq.s32.totalorder %s62, 3
      %p326 = por %p324, %p325
      %p327 = scmp.ne.s32.totalorder %s316, %s317
      %p328 = scmp.eq.s32.totalorder %s62, 0
      %p329 = por %p327, %p328
      %p330 = scmp.ne.s32.totalorder %s316, %s317
      %p331 = scmp.eq.s32.totalorder %s63, 3
      %p332 = por %p330, %p331
      %p334 = scmp.ne.s32.totalorder %s317, %s333
      %p335 = scmp.eq.s32.totalorder %s63, 0
      %p336 = por %p334, %p335
      %s337 = ssub.s32 %s65, %s72
      %p338 = scmp.eq.s32.totalorder %s337, 0
      %s340 = sadd.s32 %s339, 1
      %s341 = scalar_select %p338, %s339, %s340
      %p344 = pneg %p338
      %p345 = scmp.eq.s32.totalorder %s57, 3
      %p346 = por %p344, %p345
      %p347 = scmp.ne.s32.totalorder %s339, %s342
      %p348 = scmp.eq.s32.totalorder %s57, 0
      %p349 = por %p347, %p348
      %p350 = scmp.ne.s32.totalorder %s339, %s342
      %p351 = scmp.eq.s32.totalorder %s62, 3
      %p352 = por %p350, %p351
      %p353 = scmp.ne.s32.totalorder %s342, %s343
      %p354 = scmp.eq.s32.totalorder %s62, 0
      %p355 = por %p353, %p354
      %p356 = scmp.ne.s32.totalorder %s342, %s343
      %p357 = scmp.eq.s32.totalorder %s63, 3
      %p358 = por %p356, %p357
      %p360 = scmp.ne.s32.totalorder %s343, %s359
      %p361 = scmp.eq.s32.totalorder %s63, 0
      %p362 = por %p360, %p361
      %s363 = ssub.s32 %s65, %s72
      %p364 = scmp.eq.s32.totalorder %s363, 0
      %s366 = sadd.s32 %s365, 1
      %s367 = scalar_select %p364, %s365, %s366
      %p370 = pneg %p364
      %p371 = scmp.eq.s32.totalorder %s57, 3
      %p372 = por %p370, %p371
      %p373 = scmp.ne.s32.totalorder %s365, %s368
      %p374 = scmp.eq.s32.totalorder %s57, 0
      %p375 = por %p373, %p374
      %p376 = scmp.ne.s32.totalorder %s365, %s368
      %p377 = scmp.eq.s32.totalorder %s62, 3
      %p378 = por %p376, %p377
      %p379 = scmp.ne.s32.totalorder %s368, %s369
      %p380 = scmp.eq.s32.totalorder %s62, 0
      %p381 = por %p379, %p380
      %p382 = scmp.ne.s32.totalorder %s368, %s369
      %p383 = scmp.eq.s32.totalorder %s63, 3
      %p384 = por %p382, %p383
      %p386 = scmp.ne.s32.totalorder %s369, %s385
      %p387 = scmp.eq.s32.totalorder %s63, 0
      %p388 = por %p386, %p387
      %s389 = ssub.s32 %s65, %s72
      %p390 = scmp.eq.s32.totalorder %s389, 0
      %s392 = sadd.s32 %s391, 1
      %s393 = scalar_select %p390, %s391, %s392
      %p396 = pneg %p390
      %p397 = scmp.eq.s32.totalorder %s57, 3
      %p398 = por %p396, %p397
      %p399 = scmp.ne.s32.totalorder %s391, %s394
      %p400 = scmp.eq.s32.totalorder %s57, 0
      %p401 = por %p399, %p400
      %p402 = scmp.ne.s32.totalorder %s391, %s394
      %p403 = scmp.eq.s32.totalorder %s62, 3
      %p404 = por %p402, %p403
      %p405 = scmp.ne.s32.totalorder %s394, %s395
      %p406 = scmp.eq.s32.totalorder %s62, 0
      %p407 = por %p405, %p406
      %p408 = scmp.ne.s32.totalorder %s394, %s395
      %p409 = scmp.eq.s32.totalorder %s63, 3
      %p410 = por %p408, %p409
      %p412 = scmp.ne.s32.totalorder %s395, %s411
      %p413 = scmp.eq.s32.totalorder %s63, 0
      %p414 = por %p412, %p413
      %s415 = ssub.s32 %s65, %s72
      %p416 = scmp.eq.s32.totalorder %s415, 0
      %s418 = sadd.s32 %s417, 1
      %s419 = scalar_select %p416, %s417, %s418
      %p422 = pneg %p416
      %p423 = scmp.eq.s32.totalorder %s57, 3
      %p424 = por %p422, %p423
      %p425 = scmp.ne.s32.totalorder %s417, %s420
      %p426 = scmp.eq.s32.totalorder %s57, 0
      %p427 = por %p425, %p426
      %p428 = scmp.ne.s32.totalorder %s417, %s420
      %p429 = scmp.eq.s32.totalorder %s62, 3
      %p430 = por %p428, %p429
      %p431 = scmp.ne.s32.totalorder %s420, %s421
      %p432 = scmp.eq.s32.totalorder %s62, 0
      %p433 = por %p431, %p432
      %p434 = scmp.ne.s32.totalorder %s420, %s421
      %p435 = scmp.eq.s32.totalorder %s63, 3
      %p436 = por %p434, %p435
      %p438 = scmp.ne.s32.totalorder %s421, %s437
      %p439 = scmp.eq.s32.totalorder %s63, 0
      %p440 = por %p438, %p439
      %s441 = ssub.s32 %s65, %s72
      %p442 = scmp.eq.s32.totalorder %s441, 0
      %s444 = sadd.s32 %s443, 1
      %s445 = scalar_select %p442, %s443, %s444
      %p448 = pneg %p442
      %p449 = scmp.eq.s32.totalorder %s57, 3
      %p450 = por %p448, %p449
      %p451 = scmp.ne.s32.totalorder %s443, %s446
      %p452 = scmp.eq.s32.totalorder %s57, 0
      %p453 = por %p451, %p452
      %p454 = scmp.ne.s32.totalorder %s443, %s446
      %p455 = scmp.eq.s32.totalorder %s62, 3
      %p456 = por %p454, %p455
      %p457 = scmp.ne.s32.totalorder %s446, %s447
      %p458 = scmp.eq.s32.totalorder %s62, 0
      %p459 = por %p457, %p458
      %p460 = scmp.ne.s32.totalorder %s446, %s447
      %p461 = scmp.eq.s32.totalorder %s63, 3
      %p462 = por %p460, %p461
      %p464 = scmp.ne.s32.totalorder %s447, %s463
      %p465 = scmp.eq.s32.totalorder %s63, 0
      %p466 = por %p464, %p465
      %s467 = ssub.s32 %s65, %s72
      %p468 = scmp.eq.s32.totalorder %s467, 0
      %s470 = sadd.s32 %s469, 1
      %s471 = scalar_select %p468, %s469, %s470
      %p474 = pneg %p468
      %p475 = scmp.eq.s32.totalorder %s57, 3
      %p476 = por %p474, %p475
      %p477 = scmp.ne.s32.totalorder %s469, %s472
      %p478 = scmp.eq.s32.totalorder %s57, 0
      %p479 = por %p477, %p478
      %p480 = scmp.ne.s32.totalorder %s469, %s472
      %p481 = scmp.eq.s32.totalorder %s62, 3
      %p482 = por %p480, %p481
      %p483 = scmp.ne.s32.totalorder %s472, %s473
      %p484 = scmp.eq.s32.totalorder %s62, 0
      %p485 = por %p483, %p484
      %p486 = scmp.ne.s32.totalorder %s472, %s473
      %p487 = scmp.eq.s32.totalorder %s63, 3
      %p488 = por %p486, %p487
      %p490 = scmp.ne.s32.totalorder %s473, %s489
      %p491 = scmp.eq.s32.totalorder %s63, 0
      %p492 = por %p490, %p491
      %s493 = ssub.s32 %s65, %s72
      %p494 = scmp.eq.s32.totalorder %s493, 0
      %s496 = sadd.s32 %s495, 1
      %s497 = scalar_select %p494, %s495, %s496
      %p500 = pneg %p494
      %p501 = scmp.eq.s32.totalorder %s57, 3
      %p502 = por %p500, %p501
      %p503 = scmp.ne.s32.totalorder %s495, %s498
      %p504 = scmp.eq.s32.totalorder %s57, 0
      %p505 = por %p503, %p504
      %p506 = scmp.ne.s32.totalorder %s495, %s498
      %p507 = scmp.eq.s32.totalorder %s62, 3
      %p508 = por %p506, %p507
      %p509 = scmp.ne.s32.totalorder %s498, %s499
      %p510 = scmp.eq.s32.totalorder %s62, 0
      %p511 = por %p509, %p510
      %p512 = scmp.ne.s32.totalorder %s498, %s499
      %p513 = scmp.eq.s32.totalorder %s63, 3
      %p514 = por %p512, %p513
      %p516 = scmp.ne.s32.totalorder %s499, %s515
      %p517 = scmp.eq.s32.totalorder %s63, 0
      %p518 = por %p516, %p517
      %s519 = ssub.s32 %s65, %s72
      %p520 = scmp.eq.s32.totalorder %s519, 0
      %s522 = sadd.s32 %s521, 1
      %s523 = scalar_select %p520, %s521, %s522
      %p526 = pneg %p520
      %p527 = scmp.eq.s32.totalorder %s57, 3
      %p528 = por %p526, %p527
      %p529 = scmp.ne.s32.totalorder %s521, %s524
      %p530 = scmp.eq.s32.totalorder %s57, 0
      %p531 = por %p529, %p530
      %p532 = scmp.ne.s32.totalorder %s521, %s524
      %p533 = scmp.eq.s32.totalorder %s62, 3
      %p534 = por %p532, %p533
      %p535 = scmp.ne.s32.totalorder %s524, %s525
      %p536 = scmp.eq.s32.totalorder %s62, 0
      %p537 = por %p535, %p536
      %p538 = scmp.ne.s32.totalorder %s524, %s525
      %p539 = scmp.eq.s32.totalorder %s63, 3
      %p540 = por %p538, %p539
      %p542 = scmp.ne.s32.totalorder %s525, %s541
      %p543 = scmp.eq.s32.totalorder %s63, 0
      %p544 = por %p542, %p543
      %s545 = ssub.s32 %s65, %s72
      %s546 = ssub.s32 %s64, %s76
      %s547 = sor.u32 %s545, %s546
      %p548 = scmp.eq.s32.totalorder %s547, 0
      %s550 = sadd.s32 %s549, 1
      %s551 = scalar_select %p548, %s549, %s550
      %p554 = pneg %p548
      %p555 = scmp.eq.s32.totalorder %s57, 3
      %p556 = por %p554, %p555
      %p557 = scmp.ne.s32.totalorder %s549, %s552
      %p558 = scmp.eq.s32.totalorder %s57, 0
      %p559 = por %p557, %p558
      %p560 = scmp.ne.s32.totalorder %s549, %s552
      %p561 = scmp.eq.s32.totalorder %s62, 3
      %p562 = por %p560, %p561
      %p563 = scmp.ne.s32.totalorder %s552, %s553
      %p564 = scmp.eq.s32.totalorder %s62, 0
      %p565 = por %p563, %p564
      %p566 = scmp.ne.s32.totalorder %s552, %s553
      %p567 = scmp.eq.s32.totalorder %s63, 3
      %p568 = por %p566, %p567
      %p570 = scmp.ne.s32.totalorder %s553, %s569
      %p571 = scmp.eq.s32.totalorder %s63, 0
      %p572 = por %p570, %p571
      %p573 = scmp.le.s32.totalorder 1, %s57
      %p574 = scmp.lt.s32.totalorder %s57, 5
      %p575 = pnand %p573, %p574
      %p576 = pneg %p575
      // Predicated region
      $region9: #{tpu_custom_call.1} parent=5 // pred_check
        _
      $region10: #{tpu_custom_call.1} parent=5 // pred_check_branch
        %578 = sbr.rel (%p575) target = $region12
      $region11: #{tpu_custom_call.1} parent=5 // pred_region
        %s579 = ssub.s32 %s57, 1
      $region12: #{tpu_custom_call.1} parent=5 // pred_fallthru
        _
      %p580 = scmp.lt.s32.totalorder %s57, 4
      // Predicated region
      $region13: #{tpu_custom_call.1} parent=5 // pred_check
        %p581 = pneg %p580
      $region14: #{tpu_custom_call.1} parent=5 // pred_check_branch
        %583 = sbr.rel (%p581) target = $region16
      $region15: #{tpu_custom_call.1} parent=5 // pred_region
        // Predicated region
        $region17: #{tpu_custom_call.1} parent=15 // pred_check
          %p584 = pneg %p89
        $region18: #{tpu_custom_call.1} parent=15 // pred_check_branch
          %586 = sbr.rel (%p584) target = $region20
        $region19: #{tpu_custom_call.1} parent=15 // pred_region
          %s587 = sand.u32 %s79, 1
          %s588 = scalar_lea.sflag [#allocation4], %s587
          %s589 = sand.u32 %s79, 1
          %s590 = smul.addr %s589, 8
          %s591 = scalar_lea.vmem [#allocation3], %s590
          %s593 = ssub.s32 128, 128
          %594 = vsyncadd %s588, %s593
          %s595 = smul.addr %s64, 128
          %s596 = scalar_lea.hbm %s0, %s595
          %s598 = sshll.u32 %s591, 4
          %s599 = int_to_ptr.vmem [resolvable:$true] %s598
          %601 = dma.hbm_to_vmem [thread:$0]  %s596, 128, %s599, %s588
        $region20: #{tpu_custom_call.1} parent=15 // pred_fallthru
          _
        // Predicated region
        $region21: #{tpu_custom_call.1} parent=15 // pred_check
          %p602 = pneg %p115
        $region22: #{tpu_custom_call.1} parent=15 // pred_check_branch
          %604 = sbr.rel (%p602) target = $region24
        $region23: #{tpu_custom_call.1} parent=15 // pred_region
          %s605 = sand.u32 %s57, 1
          %s606 = scalar_lea.sflag [#allocation7], %s605
          %s607 = sand.u32 %s105, 1
          %s608 = scalar_lea.vmem [#allocation6], %s607
          %s610 = ssub.s32 16, 16
          %611 = vsyncadd %s606, %s610
          %s612 = smul.addr %s64, 16
          %s613 = scalar_lea.hbm %s1, %s612
          %s615 = sshll.u32 %s608, 4
          %s616 = int_to_ptr.vmem [resolvable:$true] %s615
          %618 = dma.hbm_to_vmem [thread:$0]  %s613, 16, %s616, %s606
        $region24: #{tpu_custom_call.1} parent=15 // pred_fallthru
          _
        // Predicated region
        $region25: #{tpu_custom_call.1} parent=15 // pred_check
          %p619 = pneg %p141
        $region26: #{tpu_custom_call.1} parent=15 // pred_check_branch
          %621 = sbr.rel (%p619) target = $region28
        $region27: #{tpu_custom_call.1} parent=15 // pred_region
          %s622 = sand.u32 %s57, 1
          %s623 = scalar_lea.sflag [#allocation7], %s622
          %s624 = sand.u32 %s131, 1
          %s625 = smul.addr %s624, 32
          %s626 = scalar_lea.vmem [#allocation8], %s625
          %s628 = ssub.s32 512, 512
          %629 = vsyncadd %s623, %s628
          %s630 = smul.addr %s65, 8
          %s631 = smul.addr %s630, 64
          %s632 = scalar_lea.hbm %s2, %s631
          %s633 = sshll.u32 %s626, 4
          %s634 = int_to_ptr.vmem [resolvable:$true] %s633
          %639 = dma.hbm_to_vmem [thread:$0]  %s632, 512, %s634, %s623, 64, 64, 4
        $region28: #{tpu_custom_call.1} parent=15 // pred_fallthru
          _
        // Predicated region
        $region29: #{tpu_custom_call.1} parent=15 // pred_check
          %p640 = pneg %p167
        $region30: #{tpu_custom_call.1} parent=15 // pred_check_branch
          %642 = sbr.rel (%p640) target = $region32
        $region31: #{tpu_custom_call.1} parent=15 // pred_region
          %s643 = sand.u32 %s57, 1
          %s644 = scalar_lea.sflag [#allocation10], %s643
          %s645 = sand.u32 %s157, 1
          %s646 = smul.addr %s645, 2
          %s647 = scalar_lea.vmem [#allocation9], %s646
          %s649 = ssub.s32 32, 32
          %650 = vsyncadd %s644, %s649
          %s651 = smul.addr %s65, 2
          %s652 = smul.addr %s651, 16
          %s653 = scalar_lea.hbm %s3, %s652
          %s654 = sshll.u32 %s647, 4
          %s655 = int_to_ptr.vmem [resolvable:$true] %s654
          %660 = dma.hbm_to_vmem [thread:$0]  %s653, 32, %s655, %s644, 16, 16, 1
        $region32: #{tpu_custom_call.1} parent=15 // pred_fallthru
          _
        // Predicated region
        $region33: #{tpu_custom_call.1} parent=15 // pred_check
          %p661 = pneg %p193
        $region34: #{tpu_custom_call.1} parent=15 // pred_check_branch
          %663 = sbr.rel (%p661) target = $region36
        $region35: #{tpu_custom_call.1} parent=15 // pred_region
          %s664 = sand.u32 %s57, 1
          %s665 = scalar_lea.sflag [#allocation10], %s664
          %s666 = sand.u32 %s183, 1
          %s667 = smul.addr %s666, 32
          %s668 = scalar_lea.vmem [#allocation11], %s667
          %s670 = ssub.s32 512, 512
          %671 = vsyncadd %s665, %s670
          %s672 = smul.addr %s65, 8
          %s673 = smul.addr %s672, 64
          %s674 = scalar_lea.hbm %s4, %s673
          %s675 = sshll.u32 %s668, 4
          %s676 = int_to_ptr.vmem [resolvable:$true] %s675
          %681 = dma.hbm_to_vmem [thread:$0]  %s674, 512, %s676, %s665, 64, 64, 4
        $region36: #{tpu_custom_call.1} parent=15 // pred_fallthru
          _
        // Predicated region
        $region37: #{tpu_custom_call.1} parent=15 // pred_check
          %p682 = pneg %p219
        $region38: #{tpu_custom_call.1} parent=15 // pred_check_branch
          %684 = sbr.rel (%p682) target = $region40
        $region39: #{tpu_custom_call.1} parent=15 // pred_region
          %s685 = sand.u32 %s57, 1
          %s686 = scalar_lea.sflag [#allocation13], %s685
          %s687 = sand.u32 %s209, 1
          %s688 = smul.addr %s687, 2
          %s689 = scalar_lea.vmem [#allocation12], %s688
          %s691 = ssub.s32 32, 32
          %692 = vsyncadd %s686, %s691
          %s693 = smul.addr %s65, 2
          %s694 = smul.addr %s693, 16
          %s695 = scalar_lea.hbm %s5, %s694
          %s696 = sshll.u32 %s689, 4
          %s697 = int_to_ptr.vmem [resolvable:$true] %s696
          %702 = dma.hbm_to_vmem [thread:$0]  %s695, 32, %s697, %s686, 16, 16, 1
        $region40: #{tpu_custom_call.1} parent=15 // pred_fallthru
          _
        // Predicated region
        $region41: #{tpu_custom_call.1} parent=15 // pred_check
          %p703 = pneg %p245
        $region42: #{tpu_custom_call.1} parent=15 // pred_check_branch
          %705 = sbr.rel (%p703) target = $region44
        $region43: #{tpu_custom_call.1} parent=15 // pred_region
          %s706 = sand.u32 %s57, 1
          %s707 = scalar_lea.sflag [#allocation13], %s706
          %s708 = sand.u32 %s235, 1
          %s709 = smul.addr %s708, 32
          %s710 = scalar_lea.vmem [#allocation14], %s709
          %s712 = ssub.s32 512, 512
          %713 = vsyncadd %s707, %s712
          %s714 = smul.addr %s65, 8
          %s715 = smul.addr %s714, 64
          %s716 = scalar_lea.hbm %s6, %s715
          %s717 = sshll.u32 %s710, 4
          %s718 = int_to_ptr.vmem [resolvable:$true] %s717
          %723 = dma.hbm_to_vmem [thread:$0]  %s716, 512, %s718, %s707, 64, 64, 4
        $region44: #{tpu_custom_call.1} parent=15 // pred_fallthru
          _
        // Predicated region
        $region45: #{tpu_custom_call.1} parent=15 // pred_check
          %p724 = pneg %p271
        $region46: #{tpu_custom_call.1} parent=15 // pred_check_branch
          %726 = sbr.rel (%p724) target = $region48
        $region47: #{tpu_custom_call.1} parent=15 // pred_region
          %s727 = sand.u32 %s57, 1
          %s728 = scalar_lea.sflag [#allocation16], %s727
          %s729 = sand.u32 %s261, 1
          %s730 = smul.addr %s729, 2
          %s731 = scalar_lea.vmem [#allocation15], %s730
          %s733 = ssub.s32 32, 32
          %734 = vsyncadd %s728, %s733
          %s735 = smul.addr %s65, 2
          %s736 = smul.addr %s735, 16
          %s737 = scalar_lea.hbm %s7, %s736
          %s738 = sshll.u32 %s731, 4
          %s739 = int_to_ptr.vmem [resolvable:$true] %s738
          %744 = dma.hbm_to_vmem [thread:$0]  %s737, 32, %s739, %s728, 16, 16, 1
        $region48: #{tpu_custom_call.1} parent=15 // pred_fallthru
          _
        // Predicated region
        $region49: #{tpu_custom_call.1} parent=15 // pred_check
          %p745 = pneg %p297
        $region50: #{tpu_custom_call.1} parent=15 // pred_check_branch
          %747 = sbr.rel (%p745) target = $region52
        $region51: #{tpu_custom_call.1} parent=15 // pred_region
          %s748 = sand.u32 %s57, 1
          %s749 = scalar_lea.sflag [#allocation16], %s748
          %s750 = sand.u32 %s287, 1
          %s751 = smul.addr %s750, 16
          %s752 = scalar_lea.vmem [#allocation17], %s751
          %s754 = ssub.s32 256, 256
          %755 = vsyncadd %s749, %s754
          %s756 = smul.addr %s65, 4
          %s757 = smul.addr %s756, 64
          %s758 = scalar_lea.hbm %s8, %s757
          %s759 = sshll.u32 %s752, 4
          %s760 = int_to_ptr.vmem [resolvable:$true] %s759
          %765 = dma.hbm_to_vmem [thread:$0]  %s758, 256, %s760, %s749, 64, 64, 4
        $region52: #{tpu_custom_call.1} parent=15 // pred_fallthru
          _
        // Predicated region
        $region53: #{tpu_custom_call.1} parent=15 // pred_check
          %p766 = pneg %p323
        $region54: #{tpu_custom_call.1} parent=15 // pred_check_branch
          %768 = sbr.rel (%p766) target = $region56
        $region55: #{tpu_custom_call.1} parent=15 // pred_region
          %s769 = sand.u32 %s57, 1
          %s770 = scalar_lea.sflag [#allocation19], %s769
          %s771 = sand.u32 %s313, 1
          %s772 = scalar_lea.vmem [#allocation18], %s771
          %s774 = ssub.s32 16, 16
          %775 = vsyncadd %s770, %s774
          %s776 = smul.addr %s65, 16
          %s777 = scalar_lea.hbm %s9, %s776
          %s779 = sshll.u32 %s772, 4
          %s780 = int_to_ptr.vmem [resolvable:$true] %s779
          %782 = dma.hbm_to_vmem [thread:$0]  %s777, 16, %s780, %s770
        $region56: #{tpu_custom_call.1} parent=15 // pred_fallthru
          _
        // Predicated region
        $region57: #{tpu_custom_call.1} parent=15 // pred_check
          %p783 = pneg %p349
        $region58: #{tpu_custom_call.1} parent=15 // pred_check_branch
          %785 = sbr.rel (%p783) target = $region60
        $region59: #{tpu_custom_call.1} parent=15 // pred_region
          %s786 = sand.u32 %s57, 1
          %s787 = scalar_lea.sflag [#allocation19], %s786
          %s788 = sand.u32 %s339, 1
          %s789 = scalar_lea.vmem [#allocation20], %s788
          %s791 = ssub.s32 16, 16
          %792 = vsyncadd %s787, %s791
          %s793 = smul.addr %s65, 16
          %s794 = scalar_lea.hbm %s10, %s793
          %s796 = sshll.u32 %s789, 4
          %s797 = int_to_ptr.vmem [resolvable:$true] %s796
          %799 = dma.hbm_to_vmem [thread:$0]  %s794, 16, %s797, %s787
        $region60: #{tpu_custom_call.1} parent=15 // pred_fallthru
          _
        // Predicated region
        $region61: #{tpu_custom_call.1} parent=15 // pred_check
          %p800 = pneg %p375
        $region62: #{tpu_custom_call.1} parent=15 // pred_check_branch
          %802 = sbr.rel (%p800) target = $region64
        $region63: #{tpu_custom_call.1} parent=15 // pred_region
          %s803 = sand.u32 %s57, 1
          %s804 = scalar_lea.sflag [#allocation22], %s803
          %s805 = sand.u32 %s365, 1
          %s806 = scalar_lea.vmem [#allocation21], %s805
          %s808 = ssub.s32 16, 16
          %809 = vsyncadd %s804, %s808
          %s810 = smul.addr %s65, 16
          %s811 = scalar_lea.hbm %s11, %s810
          %s813 = sshll.u32 %s806, 4
          %s814 = int_to_ptr.vmem [resolvable:$true] %s813
          %816 = dma.hbm_to_vmem [thread:$0]  %s811, 16, %s814, %s804
        $region64: #{tpu_custom_call.1} parent=15 // pred_fallthru
          _
        // Predicated region
        $region65: #{tpu_custom_call.1} parent=15 // pred_check
          %p817 = pneg %p401
        $region66: #{tpu_custom_call.1} parent=15 // pred_check_branch
          %819 = sbr.rel (%p817) target = $region68
        $region67: #{tpu_custom_call.1} parent=15 // pred_region
          %s820 = sand.u32 %s57, 1
          %s821 = scalar_lea.sflag [#allocation22], %s820
          %s822 = sand.u32 %s391, 1
          %s823 = smul.addr %s822, 16
          %s824 = scalar_lea.vmem [#allocation23], %s823
          %s826 = ssub.s32 256, 256
          %827 = vsyncadd %s821, %s826
          %s828 = smul.addr %s65, 4
          %s829 = smul.addr %s828, 64
          %s830 = scalar_lea.hbm %s12, %s829
          %s831 = sshll.u32 %s824, 4
          %s832 = int_to_ptr.vmem [resolvable:$true] %s831
          %837 = dma.hbm_to_vmem [thread:$0]  %s830, 256, %s832, %s821, 64, 64, 4
        $region68: #{tpu_custom_call.1} parent=15 // pred_fallthru
          _
        // Predicated region
        $region69: #{tpu_custom_call.1} parent=15 // pred_check
          %p838 = pneg %p427
        $region70: #{tpu_custom_call.1} parent=15 // pred_check_branch
          %840 = sbr.rel (%p838) target = $region72
        $region71: #{tpu_custom_call.1} parent=15 // pred_region
          %s841 = sand.u32 %s57, 1
          %s842 = scalar_lea.sflag [#allocation25], %s841
          %s843 = sand.u32 %s417, 1
          %s844 = scalar_lea.vmem [#allocation24], %s843
          %s846 = ssub.s32 16, 16
          %847 = vsyncadd %s842, %s846
          %s848 = smul.addr %s65, 16
          %s849 = scalar_lea.hbm %s13, %s848
          %s851 = sshll.u32 %s844, 4
          %s852 = int_to_ptr.vmem [resolvable:$true] %s851
          %854 = dma.hbm_to_vmem [thread:$0]  %s849, 16, %s852, %s842
        $region72: #{tpu_custom_call.1} parent=15 // pred_fallthru
          _
        // Predicated region
        $region73: #{tpu_custom_call.1} parent=15 // pred_check
          %p855 = pneg %p453
        $region74: #{tpu_custom_call.1} parent=15 // pred_check_branch
          %857 = sbr.rel (%p855) target = $region76
        $region75: #{tpu_custom_call.1} parent=15 // pred_region
          %s858 = sand.u32 %s57, 1
          %s859 = scalar_lea.sflag [#allocation25], %s858
          %s860 = sand.u32 %s443, 1
          %s861 = smul.addr %s860, 64
          %s862 = scalar_lea.vmem [#allocation26], %s861
          %s864 = ssub.s32 1024, 1024
          %865 = vsyncadd %s859, %s864
          %s866 = smul.addr %s65, 16
          %s867 = smul.addr %s866, 64
          %s868 = scalar_lea.hbm %s14, %s867
          %s869 = sshll.u32 %s862, 4
          %s870 = int_to_ptr.vmem [resolvable:$true] %s869
          %875 = dma.hbm_to_vmem [thread:$0]  %s868, 1024, %s870, %s859, 64, 64, 4
        $region76: #{tpu_custom_call.1} parent=15 // pred_fallthru
          _
        // Predicated region
        $region77: #{tpu_custom_call.1} parent=15 // pred_check
          %p876 = pneg %p479
        $region78: #{tpu_custom_call.1} parent=15 // pred_check_branch
          %878 = sbr.rel (%p876) target = $region80
        $region79: #{tpu_custom_call.1} parent=15 // pred_region
          %s879 = sand.u32 %s57, 1
          %s880 = scalar_lea.sflag [#allocation28], %s879
          %s881 = sand.u32 %s469, 1
          %s882 = scalar_lea.vmem [#allocation27], %s881
          %s884 = ssub.s32 16, 16
          %885 = vsyncadd %s880, %s884
          %s886 = smul.addr %s65, 16
          %s887 = scalar_lea.hbm %s15, %s886
          %s889 = sshll.u32 %s882, 4
          %s890 = int_to_ptr.vmem [resolvable:$true] %s889
          %892 = dma.hbm_to_vmem [thread:$0]  %s887, 16, %s890, %s880
        $region80: #{tpu_custom_call.1} parent=15 // pred_fallthru
          _
        // Predicated region
        $region81: #{tpu_custom_call.1} parent=15 // pred_check
          %p893 = pneg %p505
        $region82: #{tpu_custom_call.1} parent=15 // pred_check_branch
          %895 = sbr.rel (%p893) target = $region84
        $region83: #{tpu_custom_call.1} parent=15 // pred_region
          %s896 = sand.u32 %s57, 1
          %s897 = scalar_lea.sflag [#allocation28], %s896
          %s898 = sand.u32 %s495, 1
          %s899 = scalar_lea.vmem [#allocation29], %s898
          %s901 = ssub.s32 16, 16
          %902 = vsyncadd %s897, %s901
          %s903 = smul.addr %s65, 16
          %s904 = scalar_lea.hbm %s16, %s903
          %s906 = sshll.u32 %s899, 4
          %s907 = int_to_ptr.vmem [resolvable:$true] %s906
          %909 = dma.hbm_to_vmem [thread:$0]  %s904, 16, %s907, %s897
        $region84: #{tpu_custom_call.1} parent=15 // pred_fallthru
          _
        // Predicated region
        $region85: #{tpu_custom_call.1} parent=15 // pred_check
          %p910 = pneg %p531
        $region86: #{tpu_custom_call.1} parent=15 // pred_check_branch
          %912 = sbr.rel (%p910) target = $region88
        $region87: #{tpu_custom_call.1} parent=15 // pred_region
          %s913 = sand.u32 %s521, 1
          %s914 = scalar_lea.sflag [#allocation31], %s913
          %s915 = sand.u32 %s521, 1
          %s916 = scalar_lea.vmem [#allocation30], %s915
          %s918 = ssub.s32 16, 16
          %919 = vsyncadd %s914, %s918
          %s920 = smul.addr %s65, 16
          %s921 = scalar_lea.hbm %s17, %s920
          %s923 = sshll.u32 %s916, 4
          %s924 = int_to_ptr.vmem [resolvable:$true] %s923
          %926 = dma.hbm_to_vmem [thread:$0]  %s921, 16, %s924, %s914
        $region88: #{tpu_custom_call.1} parent=15 // pred_fallthru
          _
      $region16: #{tpu_custom_call.1} parent=5 // pred_fallthru
        _
      %p927 = scmp.le.s32.totalorder 1, %s57
      %p928 = scmp.lt.s32.totalorder %s57, 5
      %p929 = pnand %p927, %p928
      %p930 = pneg %p929
      // Predicated region
      $region89: #{tpu_custom_call.1} parent=5 // pred_check
        _
      $region90: #{tpu_custom_call.1} parent=5 // pred_check_branch
        %932 = sbr.rel (%p929) target = $region92
      $region91: #{tpu_custom_call.1} parent=5 // pred_region
        %s933 = ssub.s32 %s57, 1
        %s934 = sand.u32 %s82, 1
        %s935 = scalar_lea.sflag [#allocation4], %s934
        %s936 = sand.u32 %s82, 1
        %s937 = smul.addr %s936, 8
        %s938 = scalar_lea.vmem [#allocation3], %s937
        // Predicated region
        $region93: #{tpu_custom_call.1} parent=91 // pred_check
          %p939 = pneg %p95
        $region94: #{tpu_custom_call.1} parent=91 // pred_check_branch
          %941 = sbr.rel (%p939) target = $region96
        $region95: #{tpu_custom_call.1} parent=91 // pred_region
          %942 = dma.done %s935, 128
        $region96: #{tpu_custom_call.1} parent=91 // pred_fallthru
          _
        %s943 = sand.u32 %s62, 1
        %s944 = scalar_lea.sflag [#allocation7], %s943
        %s945 = sand.u32 %s108, 1
        %s946 = scalar_lea.vmem [#allocation6], %s945
        // Predicated region
        $region97: #{tpu_custom_call.1} parent=91 // pred_check
          %p947 = pneg %p121
        $region98: #{tpu_custom_call.1} parent=91 // pred_check_branch
          %949 = sbr.rel (%p947) target = $region100
        $region99: #{tpu_custom_call.1} parent=91 // pred_region
          %950 = dma.done %s944, 16
        $region100: #{tpu_custom_call.1} parent=91 // pred_fallthru
          _
        %s951 = sand.u32 %s62, 1
        %s952 = scalar_lea.sflag [#allocation7], %s951
        %s953 = sand.u32 %s134, 1
        %s954 = smul.addr %s953, 32
        %s955 = scalar_lea.vmem [#allocation8], %s954
        // Predicated region
        $region101: #{tpu_custom_call.1} parent=91 // pred_check
          %p956 = pneg %p147
        $region102: #{tpu_custom_call.1} parent=91 // pred_check_branch
          %958 = sbr.rel (%p956) target = $region104
        $region103: #{tpu_custom_call.1} parent=91 // pred_region
          %959 = dma.done %s952, 512
        $region104: #{tpu_custom_call.1} parent=91 // pred_fallthru
          _
        %s960 = sand.u32 %s62, 1
        %s961 = scalar_lea.sflag [#allocation10], %s960
        %s962 = sand.u32 %s160, 1
        %s963 = smul.addr %s962, 2
        %s964 = scalar_lea.vmem [#allocation9], %s963
        // Predicated region
        $region105: #{tpu_custom_call.1} parent=91 // pred_check
          %p965 = pneg %p173
        $region106: #{tpu_custom_call.1} parent=91 // pred_check_branch
          %967 = sbr.rel (%p965) target = $region108
        $region107: #{tpu_custom_call.1} parent=91 // pred_region
          %968 = dma.done %s961, 32
        $region108: #{tpu_custom_call.1} parent=91 // pred_fallthru
          _
        %s969 = sand.u32 %s62, 1
        %s970 = scalar_lea.sflag [#allocation10], %s969
        %s971 = sand.u32 %s186, 1
        %s972 = smul.addr %s971, 32
        %s973 = scalar_lea.vmem [#allocation11], %s972
        // Predicated region
        $region109: #{tpu_custom_call.1} parent=91 // pred_check
          %p974 = pneg %p199
        $region110: #{tpu_custom_call.1} parent=91 // pred_check_branch
          %976 = sbr.rel (%p974) target = $region112
        $region111: #{tpu_custom_call.1} parent=91 // pred_region
          %977 = dma.done %s970, 512
        $region112: #{tpu_custom_call.1} parent=91 // pred_fallthru
          _
        %s978 = sand.u32 %s62, 1
        %s979 = scalar_lea.sflag [#allocation13], %s978
        %s980 = sand.u32 %s212, 1
        %s981 = smul.addr %s980, 2
        %s982 = scalar_lea.vmem [#allocation12], %s981
        // Predicated region
        $region113: #{tpu_custom_call.1} parent=91 // pred_check
          %p983 = pneg %p225
        $region114: #{tpu_custom_call.1} parent=91 // pred_check_branch
          %985 = sbr.rel (%p983) target = $region116
        $region115: #{tpu_custom_call.1} parent=91 // pred_region
          %986 = dma.done %s979, 32
        $region116: #{tpu_custom_call.1} parent=91 // pred_fallthru
          _
        %s987 = sand.u32 %s62, 1
        %s988 = scalar_lea.sflag [#allocation13], %s987
        %s989 = sand.u32 %s238, 1
        %s990 = smul.addr %s989, 32
        %s991 = scalar_lea.vmem [#allocation14], %s990
        // Predicated region
        $region117: #{tpu_custom_call.1} parent=91 // pred_check
          %p992 = pneg %p251
        $region118: #{tpu_custom_call.1} parent=91 // pred_check_branch
          %994 = sbr.rel (%p992) target = $region120
        $region119: #{tpu_custom_call.1} parent=91 // pred_region
          %995 = dma.done %s988, 512
        $region120: #{tpu_custom_call.1} parent=91 // pred_fallthru
          _
        %s996 = sand.u32 %s62, 1
        %s997 = scalar_lea.sflag [#allocation16], %s996
        %s998 = sand.u32 %s264, 1
        %s999 = smul.addr %s998, 2
        %s1000 = scalar_lea.vmem [#allocation15], %s999
        // Predicated region
        $region121: #{tpu_custom_call.1} parent=91 // pred_check
          %p1001 = pneg %p277
        $region122: #{tpu_custom_call.1} parent=91 // pred_check_branch
          %1003 = sbr.rel (%p1001) target = $region124
        $region123: #{tpu_custom_call.1} parent=91 // pred_region
          %1004 = dma.done %s997, 32
        $region124: #{tpu_custom_call.1} parent=91 // pred_fallthru
          _
        %s1005 = sand.u32 %s62, 1
        %s1006 = scalar_lea.sflag [#allocation16], %s1005
        %s1007 = sand.u32 %s290, 1
        %s1008 = smul.addr %s1007, 16
        %s1009 = scalar_lea.vmem [#allocation17], %s1008
        // Predicated region
        $region125: #{tpu_custom_call.1} parent=91 // pred_check
          %p1010 = pneg %p303
        $region126: #{tpu_custom_call.1} parent=91 // pred_check_branch
          %1012 = sbr.rel (%p1010) target = $region128
        $region127: #{tpu_custom_call.1} parent=91 // pred_region
          %1013 = dma.done %s1006, 256
        $region128: #{tpu_custom_call.1} parent=91 // pred_fallthru
          _
        %s1014 = sand.u32 %s62, 1
        %s1015 = scalar_lea.sflag [#allocation19], %s1014
        %s1016 = sand.u32 %s316, 1
        %s1017 = scalar_lea.vmem [#allocation18], %s1016
        // Predicated region
        $region129: #{tpu_custom_call.1} parent=91 // pred_check
          %p1018 = pneg %p329
        $region130: #{tpu_custom_call.1} parent=91 // pred_check_branch
          %1020 = sbr.rel (%p1018) target = $region132
        $region131: #{tpu_custom_call.1} parent=91 // pred_region
          %1021 = dma.done %s1015, 16
        $region132: #{tpu_custom_call.1} parent=91 // pred_fallthru
          _
        %s1022 = sand.u32 %s62, 1
        %s1023 = scalar_lea.sflag [#allocation19], %s1022
        %s1024 = sand.u32 %s342, 1
        %s1025 = scalar_lea.vmem [#allocation20], %s1024
        // Predicated region
        $region133: #{tpu_custom_call.1} parent=91 // pred_check
          %p1026 = pneg %p355
        $region134: #{tpu_custom_call.1} parent=91 // pred_check_branch
          %1028 = sbr.rel (%p1026) target = $region136
        $region135: #{tpu_custom_call.1} parent=91 // pred_region
          %1029 = dma.done %s1023, 16
        $region136: #{tpu_custom_call.1} parent=91 // pred_fallthru
          _
        %s1030 = sand.u32 %s62, 1
        %s1031 = scalar_lea.sflag [#allocation22], %s1030
        %s1032 = sand.u32 %s368, 1
        %s1033 = scalar_lea.vmem [#allocation21], %s1032
        // Predicated region
        $region137: #{tpu_custom_call.1} parent=91 // pred_check
          %p1034 = pneg %p381
        $region138: #{tpu_custom_call.1} parent=91 // pred_check_branch
          %1036 = sbr.rel (%p1034) target = $region140
        $region139: #{tpu_custom_call.1} parent=91 // pred_region
          %1037 = dma.done %s1031, 16
        $region140: #{tpu_custom_call.1} parent=91 // pred_fallthru
          _
        %s1038 = sand.u32 %s62, 1
        %s1039 = scalar_lea.sflag [#allocation22], %s1038
        %s1040 = sand.u32 %s394, 1
        %s1041 = smul.addr %s1040, 16
        %s1042 = scalar_lea.vmem [#allocation23], %s1041
        // Predicated region
        $region141: #{tpu_custom_call.1} parent=91 // pred_check
          %p1043 = pneg %p407
        $region142: #{tpu_custom_call.1} parent=91 // pred_check_branch
          %1045 = sbr.rel (%p1043) target = $region144
        $region143: #{tpu_custom_call.1} parent=91 // pred_region
          %1046 = dma.done %s1039, 256
        $region144: #{tpu_custom_call.1} parent=91 // pred_fallthru
          _
        %s1047 = sand.u32 %s62, 1
        %s1048 = scalar_lea.sflag [#allocation25], %s1047
        %s1049 = sand.u32 %s420, 1
        %s1050 = scalar_lea.vmem [#allocation24], %s1049
        // Predicated region
        $region145: #{tpu_custom_call.1} parent=91 // pred_check
          %p1051 = pneg %p433
        $region146: #{tpu_custom_call.1} parent=91 // pred_check_branch
          %1053 = sbr.rel (%p1051) target = $region148
        $region147: #{tpu_custom_call.1} parent=91 // pred_region
          %1054 = dma.done %s1048, 16
        $region148: #{tpu_custom_call.1} parent=91 // pred_fallthru
          _
        %s1055 = sand.u32 %s62, 1
        %s1056 = scalar_lea.sflag [#allocation25], %s1055
        %s1057 = sand.u32 %s446, 1
        %s1058 = smul.addr %s1057, 64
        %s1059 = scalar_lea.vmem [#allocation26], %s1058
        // Predicated region
        $region149: #{tpu_custom_call.1} parent=91 // pred_check
          %p1060 = pneg %p459
        $region150: #{tpu_custom_call.1} parent=91 // pred_check_branch
          %1062 = sbr.rel (%p1060) target = $region152
        $region151: #{tpu_custom_call.1} parent=91 // pred_region
          %1063 = dma.done %s1056, 1024
        $region152: #{tpu_custom_call.1} parent=91 // pred_fallthru
          _
        %s1064 = sand.u32 %s62, 1
        %s1065 = scalar_lea.sflag [#allocation28], %s1064
        %s1066 = sand.u32 %s472, 1
        %s1067 = scalar_lea.vmem [#allocation27], %s1066
        // Predicated region
        $region153: #{tpu_custom_call.1} parent=91 // pred_check
          %p1068 = pneg %p485
        $region154: #{tpu_custom_call.1} parent=91 // pred_check_branch
          %1070 = sbr.rel (%p1068) target = $region156
        $region155: #{tpu_custom_call.1} parent=91 // pred_region
          %1071 = dma.done %s1065, 16
        $region156: #{tpu_custom_call.1} parent=91 // pred_fallthru
          _
        %s1072 = sand.u32 %s62, 1
        %s1073 = scalar_lea.sflag [#allocation28], %s1072
        %s1074 = sand.u32 %s498, 1
        %s1075 = scalar_lea.vmem [#allocation29], %s1074
        // Predicated region
        $region157: #{tpu_custom_call.1} parent=91 // pred_check
          %p1076 = pneg %p511
        $region158: #{tpu_custom_call.1} parent=91 // pred_check_branch
          %1078 = sbr.rel (%p1076) target = $region160
        $region159: #{tpu_custom_call.1} parent=91 // pred_region
          %1079 = dma.done %s1073, 16
        $region160: #{tpu_custom_call.1} parent=91 // pred_fallthru
          _
        %s1080 = sand.u32 %s524, 1
        %s1081 = scalar_lea.sflag [#allocation31], %s1080
        %s1082 = sand.u32 %s524, 1
        %s1083 = scalar_lea.vmem [#allocation30], %s1082
        // Predicated region
        $region161: #{tpu_custom_call.1} parent=91 // pred_check
          %p1084 = pneg %p537
        $region162: #{tpu_custom_call.1} parent=91 // pred_check_branch
          %1086 = sbr.rel (%p1084) target = $region164
        $region163: #{tpu_custom_call.1} parent=91 // pred_region
          %1087 = dma.done %s1081, 16
        $region164: #{tpu_custom_call.1} parent=91 // pred_fallthru
          _
        %s1088 = sand.u32 %s82, 1
        %s1089 = scalar_lea.sflag [#allocation4], %s1088
        %s1090 = sand.u32 %s82, 1
        %s1091 = smul.addr %s1090, 8
        %s1092 = scalar_lea.vmem [#allocation3], %s1091
        %p1093 = pneg %p95
        %p1094 = pneg %p92
        %s1095 = sand.u32 %s62, 1
        %s1096 = scalar_lea.sflag [#allocation7], %s1095
        %s1097 = sand.u32 %s108, 1
        %s1098 = scalar_lea.vmem [#allocation6], %s1097
        %p1099 = pneg %p121
        %p1100 = pneg %p118
        %s1101 = sand.u32 %s62, 1
        %s1102 = scalar_lea.sflag [#allocation7], %s1101
        %s1103 = sand.u32 %s134, 1
        %s1104 = smul.addr %s1103, 32
        %s1105 = scalar_lea.vmem [#allocation8], %s1104
        %p1106 = pneg %p147
        %p1107 = pneg %p144
        %s1108 = sand.u32 %s62, 1
        %s1109 = scalar_lea.sflag [#allocation10], %s1108
        %s1110 = sand.u32 %s160, 1
        %s1111 = smul.addr %s1110, 2
        %s1112 = scalar_lea.vmem [#allocation9], %s1111
        %p1113 = pneg %p173
        %p1114 = pneg %p170
        %s1115 = sand.u32 %s62, 1
        %s1116 = scalar_lea.sflag [#allocation10], %s1115
        %s1117 = sand.u32 %s186, 1
        %s1118 = smul.addr %s1117, 32
        %s1119 = scalar_lea.vmem [#allocation11], %s1118
        %p1120 = pneg %p199
        %p1121 = pneg %p196
        %s1122 = sand.u32 %s62, 1
        %s1123 = scalar_lea.sflag [#allocation13], %s1122
        %s1124 = sand.u32 %s212, 1
        %s1125 = smul.addr %s1124, 2
        %s1126 = scalar_lea.vmem [#allocation12], %s1125
        %p1127 = pneg %p225
        %p1128 = pneg %p222
        %s1129 = sand.u32 %s62, 1
        %s1130 = scalar_lea.sflag [#allocation13], %s1129
        %s1131 = sand.u32 %s238, 1
        %s1132 = smul.addr %s1131, 32
        %s1133 = scalar_lea.vmem [#allocation14], %s1132
        %p1134 = pneg %p251
        %p1135 = pneg %p248
        %s1136 = sand.u32 %s62, 1
        %s1137 = scalar_lea.sflag [#allocation16], %s1136
        %s1138 = sand.u32 %s264, 1
        %s1139 = smul.addr %s1138, 2
        %s1140 = scalar_lea.vmem [#allocation15], %s1139
        %p1141 = pneg %p277
        %p1142 = pneg %p274
        %s1143 = sand.u32 %s62, 1
        %s1144 = scalar_lea.sflag [#allocation16], %s1143
        %s1145 = sand.u32 %s290, 1
        %s1146 = smul.addr %s1145, 16
        %s1147 = scalar_lea.vmem [#allocation17], %s1146
        %p1148 = pneg %p303
        %p1149 = pneg %p300
        %s1150 = sand.u32 %s62, 1
        %s1151 = scalar_lea.sflag [#allocation19], %s1150
        %s1152 = sand.u32 %s316, 1
        %s1153 = scalar_lea.vmem [#allocation18], %s1152
        %p1154 = pneg %p329
        %p1155 = pneg %p326
        %s1156 = sand.u32 %s62, 1
        %s1157 = scalar_lea.sflag [#allocation19], %s1156
        %s1158 = sand.u32 %s342, 1
        %s1159 = scalar_lea.vmem [#allocation20], %s1158
        %p1160 = pneg %p355
        %p1161 = pneg %p352
        %s1162 = sand.u32 %s62, 1
        %s1163 = scalar_lea.sflag [#allocation22], %s1162
        %s1164 = sand.u32 %s368, 1
        %s1165 = scalar_lea.vmem [#allocation21], %s1164
        %p1166 = pneg %p381
        %p1167 = pneg %p378
        %s1168 = sand.u32 %s62, 1
        %s1169 = scalar_lea.sflag [#allocation22], %s1168
        %s1170 = sand.u32 %s394, 1
        %s1171 = smul.addr %s1170, 16
        %s1172 = scalar_lea.vmem [#allocation23], %s1171
        %p1173 = pneg %p407
        %p1174 = pneg %p404
        %s1175 = sand.u32 %s62, 1
        %s1176 = scalar_lea.sflag [#allocation25], %s1175
        %s1177 = sand.u32 %s420, 1
        %s1178 = scalar_lea.vmem [#allocation24], %s1177
        %p1179 = pneg %p433
        %p1180 = pneg %p430
        %s1181 = sand.u32 %s62, 1
        %s1182 = scalar_lea.sflag [#allocation25], %s1181
        %s1183 = sand.u32 %s446, 1
        %s1184 = smul.addr %s1183, 64
        %s1185 = scalar_lea.vmem [#allocation26], %s1184
        %p1186 = pneg %p459
        %p1187 = pneg %p456
        %s1188 = sand.u32 %s62, 1
        %s1189 = scalar_lea.sflag [#allocation28], %s1188
        %s1190 = sand.u32 %s472, 1
        %s1191 = scalar_lea.vmem [#allocation27], %s1190
        %p1192 = pneg %p485
        %p1193 = pneg %p482
        %s1194 = sand.u32 %s62, 1
        %s1195 = scalar_lea.sflag [#allocation28], %s1194
        %s1196 = sand.u32 %s498, 1
        %s1197 = scalar_lea.vmem [#allocation29], %s1196
        %p1198 = pneg %p511
        %p1199 = pneg %p508
        %s1200 = sand.u32 %s524, 1
        %s1201 = scalar_lea.sflag [#allocation31], %s1200
        %s1202 = sand.u32 %s524, 1
        %s1203 = scalar_lea.vmem [#allocation30], %s1202
        %p1204 = pneg %p537
        %p1205 = pneg %p534
        %p1206 = pneg %p565
        %p1207 = pneg %p562
        %s1208 = sand.u32 %s552, 1
        %s1209 = scalar_lea.sflag [#allocation5], %s1208
        %s1210 = sand.u32 %s552, 1
        %s1211 = smul.addr %s1210, 8
        %s1212 = scalar_lea.vmem [#allocation32], %s1211
        %p1214 = scmp.eq.s32.totalorder %s67, 0
        // Predicated region
        $region165: #{tpu_custom_call.1} parent=91 // pred_check
          %p1215 = pneg %p1214
        $region166: #{tpu_custom_call.1} parent=91 // pred_check_branch
          %1217 = sbr.rel (%p1215) target = $region168
        $region167: #{tpu_custom_call.1} parent=91 // pred_region
          %v1218 = vld [vmem:[%s938] sm:$0xff]
          %vm1219 = vcmask 261120
          %1220 = vst.msk [vmem:[#allocation2] sm:$0xff] %vm1219, %v1218
        $region168: #{tpu_custom_call.1} parent=91 // pred_fallthru
          _
        %v1221 = vld [vmem:[#allocation2] sm:$0xff]
        %v1222 = vpack.c.bf16 %v1221, %v1221
        %v1223 = vld [vmem:[%s946] sm:$0x1]
        %v1224 = vld [vmem:[%s955] sm:$0xf]
        %v1225 = vld [vmem:[%s955 + $0x4] sm:$0xf]
        %v1226 = vld [vmem:[%s955 + $0x8] sm:$0xf]
        %v1227 = vld [vmem:[%s955 + $0xc] sm:$0xf]
        %v1228 = vld [vmem:[%s955 + $0x10] sm:$0xf]
        %v1229 = vld [vmem:[%s955 + $0x14] sm:$0xf]
        %v1230 = vld [vmem:[%s955 + $0x18] sm:$0xf]
        %v1231 = vld [vmem:[%s955 + $0x1c] sm:$0xf]
        %v1232 = vld [vmem:[%s964] sm:$0x1]
        %v1233 = vld [vmem:[%s964 + $0x1] sm:$0x1]
        %v1236 = vlaneseq
        %v1237 = vshrl.u32 %v1236, 7
        %v1238 = vsub.s32 0, %v1237
        %v1239 = vrot.slane %v1232, %v1238
        %v1240 = vlaneseq
        %v1241 = vshrl.u32 %v1240, 7
        %v1242 = vsub.s32 0, %v1241
        %v1243 = vrot.slane %v1233, %v1242
        %v1250 = vunpack.c.l.b16 %v1224
        %v1251 = vunpack.c.l.b16 %v1225
        %v1252 = vunpack.c.l.b16 %v1226
        %v1253 = vunpack.c.l.b16 %v1227
        %v1254 = vpack.c.b16 %v1251, %v1250
        %v1255 = vpack.c.b16 %v1253, %v1252
        %vm1258 = vcmask 261120
        %v1260 = vsel %vm1258, %v1222, 0
        %1262 = vmatprep.subr.bf16.mxu0 0
        %1263 = vmatpush1.bf16.msra.mxu0 %v1254
        %1264 = vmatprep.subr.bf16.mxu0 0
        %1265 = vmatpush1.bf16.msra.mxu0 %v1255
        %1266 = vmatprep.subr.bf16.mxu0 0
        %1267 = vmatpush1.bf16.msra.mxu0 0
        %1268 = vmatprep.subr.bf16.mxu0 0
        %1269 = vmatpush1.bf16.msra.mxu0 0
        %1270 = vmatprep.subr.bf16.mxu0 0
        %1271 = vmatpush1.bf16.msra.mxu0 0
        %1272 = vmatprep.subr.bf16.mxu0 0
        %1273 = vmatpush1.bf16.msra.mxu0 0
        %1274 = vmatprep.subr.bf16.mxu0 0
        %1275 = vmatpush1.bf16.msra.mxu0 0
        %1276 = vmatprep.subr.bf16.mxu0 0
        %1277 = vmatpush1.bf16.msra.mxu0 0
        %1278 = vmatprep.subr.bf16.mxu0 0
        %1279 = vmatpush1.bf16.msra.mxu0 0
        %1280 = vmatprep.subr.bf16.mxu0 0
        %1281 = vmatpush1.bf16.msra.mxu0 0
        %1282 = vmatprep.subr.bf16.mxu0 0
        %1283 = vmatpush1.bf16.msra.mxu0 0
        %1284 = vmatprep.subr.bf16.mxu0 0
        %1285 = vmatpush1.bf16.msra.mxu0 0
        %1286 = vmatprep.subr.bf16.mxu0 0
        %1287 = vmatpush1.bf16.msra.mxu0 0
        %1288 = vmatprep.subr.bf16.mxu0 0
        %1289 = vmatpush1.bf16.msra.mxu0 0
        %1290 = vmatprep.subr.bf16.mxu0 0
        %1291 = vmatpush1.bf16.msra.mxu0 0
        %1292 = vmatprep.subr.bf16.mxu0 0
        %1293 = vmatpush1.bf16.msra.mxu0 0
        %1294 = vmatprep.mubr.bf16.mxu0 0
        %1295 = vmatmul.mubr.bf16.gmra.mrb[0].mxu0 %v1260
        %v1296 = vpop.f32.mrb[0].mxu0
        %v1297 = vadd.f32 %v1239, %v1296
        %v1298 = vpop.f32.mrb[0].mxu0
        %v1299 = vpop.f32.mrb[0].mxu0
        %v1300 = vpop.f32.mrb[0].mxu0
        %1301 = vdwg.mxu0
        %v1306 = vunpack.c.l.b16 %v1228
        %v1307 = vunpack.c.l.b16 %v1229
        %v1308 = vunpack.c.l.b16 %v1230
        %v1309 = vunpack.c.l.b16 %v1231
        %v1310 = vpack.c.b16 %v1307, %v1306
        %v1311 = vpack.c.b16 %v1309, %v1308
        %1314 = vmatprep.subr.bf16.mxu0 0
        %1315 = vmatpush1.bf16.msra.mxu0 %v1310
        %1316 = vmatprep.subr.bf16.mxu0 0
        %1317 = vmatpush1.bf16.msra.mxu0 %v1311
        %1318 = vmatprep.subr.bf16.mxu0 0
        %1319 = vmatpush1.bf16.msra.mxu0 0
        %1320 = vmatprep.subr.bf16.mxu0 0
        %1321 = vmatpush1.bf16.msra.mxu0 0
        %1322 = vmatprep.subr.bf16.mxu0 0
        %1323 = vmatpush1.bf16.msra.mxu0 0
        %1324 = vmatprep.subr.bf16.mxu0 0
        %1325 = vmatpush1.bf16.msra.mxu0 0
        %1326 = vmatprep.subr.bf16.mxu0 0
        %1327 = vmatpush1.bf16.msra.mxu0 0
        %1328 = vmatprep.subr.bf16.mxu0 0
        %1329 = vmatpush1.bf16.msra.mxu0 0
        %1330 = vmatprep.subr.bf16.mxu0 0
        %1331 = vmatpush1.bf16.msra.mxu0 0
        %1332 = vmatprep.subr.bf16.mxu0 0
        %1333 = vmatpush1.bf16.msra.mxu0 0
        %1334 = vmatprep.subr.bf16.mxu0 0
        %1335 = vmatpush1.bf16.msra.mxu0 0
        %1336 = vmatprep.subr.bf16.mxu0 0
        %1337 = vmatpush1.bf16.msra.mxu0 0
        %1338 = vmatprep.subr.bf16.mxu0 0
        %1339 = vmatpush1.bf16.msra.mxu0 0
        %1340 = vmatprep.subr.bf16.mxu0 0
        %1341 = vmatpush1.bf16.msra.mxu0 0
        %1342 = vmatprep.subr.bf16.mxu0 0
        %1343 = vmatpush1.bf16.msra.mxu0 0
        %1344 = vmatprep.subr.bf16.mxu0 0
        %1345 = vmatpush1.bf16.msra.mxu0 0
        %1346 = vmatprep.mubr.bf16.mxu0 0
        %1347 = vmatmul.mubr.bf16.gmra.mrb[0].mxu0 %v1260
        %v1348 = vpop.f32.mrb[0].mxu0
        %v1349 = vadd.f32 %v1243, %v1348
        %v1350 = vpop.f32.mrb[0].mxu0
        %v1351 = vpop.f32.mrb[0].mxu0
        %v1352 = vpop.f32.mrb[0].mxu0
        %1353 = vdwg.mxu0
        %v1354 = vld [vmem:[%s973] sm:$0xf]
        %v1355 = vld [vmem:[%s973 + $0x4] sm:$0xf]
        %v1356 = vld [vmem:[%s973 + $0x8] sm:$0xf]
        %v1357 = vld [vmem:[%s973 + $0xc] sm:$0xf]
        %v1358 = vld [vmem:[%s973 + $0x10] sm:$0xf]
        %v1359 = vld [vmem:[%s973 + $0x14] sm:$0xf]
        %v1360 = vld [vmem:[%s973 + $0x18] sm:$0xf]
        %v1361 = vld [vmem:[%s973 + $0x1c] sm:$0xf]
        %v1362 = vld [vmem:[%s982] sm:$0x1]
        %v1363 = vld [vmem:[%s982 + $0x1] sm:$0x1]
        %v1366 = vlaneseq
        %v1367 = vshrl.u32 %v1366, 7
        %v1368 = vsub.s32 0, %v1367
        %v1369 = vrot.slane %v1362, %v1368
        %v1370 = vlaneseq
        %v1371 = vshrl.u32 %v1370, 7
        %v1372 = vsub.s32 0, %v1371
        %v1373 = vrot.slane %v1363, %v1372
        %v1380 = vunpack.c.l.b16 %v1354
        %v1381 = vunpack.c.l.b16 %v1355
        %v1382 = vunpack.c.l.b16 %v1356
        %v1383 = vunpack.c.l.b16 %v1357
        %v1384 = vpack.c.b16 %v1381, %v1380
        %v1385 = vpack.c.b16 %v1383, %v1382
        %1388 = vmatprep.subr.bf16.mxu0 0
        %1389 = vmatpush1.bf16.msra.mxu0 %v1384
        %1390 = vmatprep.subr.bf16.mxu0 0
        %1391 = vmatpush1.bf16.msra.mxu0 %v1385
        %1392 = vmatprep.subr.bf16.mxu0 0
        %1393 = vmatpush1.bf16.msra.mxu0 0
        %1394 = vmatprep.subr.bf16.mxu0 0
        %1395 = vmatpush1.bf16.msra.mxu0 0
        %1396 = vmatprep.subr.bf16.mxu0 0
        %1397 = vmatpush1.bf16.msra.mxu0 0
        %1398 = vmatprep.subr.bf16.mxu0 0
        %1399 = vmatpush1.bf16.msra.mxu0 0
        %1400 = vmatprep.subr.bf16.mxu0 0
        %1401 = vmatpush1.bf16.msra.mxu0 0
        %1402 = vmatprep.subr.bf16.mxu0 0
        %1403 = vmatpush1.bf16.msra.mxu0 0
        %1404 = vmatprep.subr.bf16.mxu0 0
        %1405 = vmatpush1.bf16.msra.mxu0 0
        %1406 = vmatprep.subr.bf16.mxu0 0
        %1407 = vmatpush1.bf16.msra.mxu0 0
        %1408 = vmatprep.subr.bf16.mxu0 0
        %1409 = vmatpush1.bf16.msra.mxu0 0
        %1410 = vmatprep.subr.bf16.mxu0 0
        %1411 = vmatpush1.bf16.msra.mxu0 0
        %1412 = vmatprep.subr.bf16.mxu0 0
        %1413 = vmatpush1.bf16.msra.mxu0 0
        %1414 = vmatprep.subr.bf16.mxu0 0
        %1415 = vmatpush1.bf16.msra.mxu0 0
        %1416 = vmatprep.subr.bf16.mxu0 0
        %1417 = vmatpush1.bf16.msra.mxu0 0
        %1418 = vmatprep.subr.bf16.mxu0 0
        %1419 = vmatpush1.bf16.msra.mxu0 0
        %1420 = vmatprep.mubr.bf16.mxu0 0
        %1421 = vmatmul.mubr.bf16.gmra.mrb[0].mxu0 %v1260
        %v1422 = vpop.f32.mrb[0].mxu0
        %v1423 = vadd.f32 %v1369, %v1422
        %v1424 = vpop.f32.mrb[0].mxu0
        %v1425 = vpop.f32.mrb[0].mxu0
        %v1426 = vpop.f32.mrb[0].mxu0
        %1427 = vdwg.mxu0
        %v1432 = vunpack.c.l.b16 %v1358
        %v1433 = vunpack.c.l.b16 %v1359
        %v1434 = vunpack.c.l.b16 %v1360
        %v1435 = vunpack.c.l.b16 %v1361
        %v1436 = vpack.c.b16 %v1433, %v1432
        %v1437 = vpack.c.b16 %v1435, %v1434
        %1440 = vmatprep.subr.bf16.mxu0 0
        %1441 = vmatpush1.bf16.msra.mxu0 %v1436
        %1442 = vmatprep.subr.bf16.mxu0 0
        %1443 = vmatpush1.bf16.msra.mxu0 %v1437
        %1444 = vmatprep.subr.bf16.mxu0 0
        %1445 = vmatpush1.bf16.msra.mxu0 0
        %1446 = vmatprep.subr.bf16.mxu0 0
        %1447 = vmatpush1.bf16.msra.mxu0 0
        %1448 = vmatprep.subr.bf16.mxu0 0
        %1449 = vmatpush1.bf16.msra.mxu0 0
        %1450 = vmatprep.subr.bf16.mxu0 0
        %1451 = vmatpush1.bf16.msra.mxu0 0
        %1452 = vmatprep.subr.bf16.mxu0 0
        %1453 = vmatpush1.bf16.msra.mxu0 0
        %1454 = vmatprep.subr.bf16.mxu0 0
        %1455 = vmatpush1.bf16.msra.mxu0 0
        %1456 = vmatprep.subr.bf16.mxu0 0
        %1457 = vmatpush1.bf16.msra.mxu0 0
        %1458 = vmatprep.subr.bf16.mxu0 0
        %1459 = vmatpush1.bf16.msra.mxu0 0
        %1460 = vmatprep.subr.bf16.mxu0 0
        %1461 = vmatpush1.bf16.msra.mxu0 0
        %1462 = vmatprep.subr.bf16.mxu0 0
        %1463 = vmatpush1.bf16.msra.mxu0 0
        %1464 = vmatprep.subr.bf16.mxu0 0
        %1465 = vmatpush1.bf16.msra.mxu0 0
        %1466 = vmatprep.subr.bf16.mxu0 0
        %1467 = vmatpush1.bf16.msra.mxu0 0
        %1468 = vmatprep.subr.bf16.mxu0 0
        %1469 = vmatpush1.bf16.msra.mxu0 0
        %1470 = vmatprep.subr.bf16.mxu0 0
        %1471 = vmatpush1.bf16.msra.mxu0 0
        %1472 = vmatprep.mubr.bf16.mxu0 0
        %1473 = vmatmul.mubr.bf16.gmra.mrb[0].mxu0 %v1260
        %v1474 = vpop.f32.mrb[0].mxu0
        %v1475 = vadd.f32 %v1373, %v1474
        %v1476 = vpop.f32.mrb[0].mxu0
        %v1477 = vpop.f32.mrb[0].mxu0
        %v1478 = vpop.f32.mrb[0].mxu0
        %1479 = vdwg.mxu0
        %v1480 = vld [vmem:[%s991] sm:$0xf]
        %v1481 = vld [vmem:[%s991 + $0x4] sm:$0xf]
        %v1482 = vld [vmem:[%s991 + $0x8] sm:$0xf]
        %v1483 = vld [vmem:[%s991 + $0xc] sm:$0xf]
        %v1484 = vld [vmem:[%s991 + $0x10] sm:$0xf]
        %v1485 = vld [vmem:[%s991 + $0x14] sm:$0xf]
        %v1486 = vld [vmem:[%s991 + $0x18] sm:$0xf]
        %v1487 = vld [vmem:[%s991 + $0x1c] sm:$0xf]
        %v1488 = vld [vmem:[%s1000] sm:$0x1]
        %v1489 = vld [vmem:[%s1000 + $0x1] sm:$0x1]
        %v1492 = vlaneseq
        %v1493 = vshrl.u32 %v1492, 7
        %v1494 = vsub.s32 0, %v1493
        %v1495 = vrot.slane %v1488, %v1494
        %v1496 = vlaneseq
        %v1497 = vshrl.u32 %v1496, 7
        %v1498 = vsub.s32 0, %v1497
        %v1499 = vrot.slane %v1489, %v1498
        %v1506 = vunpack.c.l.b16 %v1480
        %v1507 = vunpack.c.l.b16 %v1481
        %v1508 = vunpack.c.l.b16 %v1482
        %v1509 = vunpack.c.l.b16 %v1483
        %v1510 = vpack.c.b16 %v1507, %v1506
        %v1511 = vpack.c.b16 %v1509, %v1508
        %1514 = vmatprep.subr.bf16.mxu0 0
        %1515 = vmatpush1.bf16.msra.mxu0 %v1510
        %1516 = vmatprep.subr.bf16.mxu0 0
        %1517 = vmatpush1.bf16.msra.mxu0 %v1511
        %1518 = vmatprep.subr.bf16.mxu0 0
        %1519 = vmatpush1.bf16.msra.mxu0 0
        %1520 = vmatprep.subr.bf16.mxu0 0
        %1521 = vmatpush1.bf16.msra.mxu0 0
        %1522 = vmatprep.subr.bf16.mxu0 0
        %1523 = vmatpush1.bf16.msra.mxu0 0
        %1524 = vmatprep.subr.bf16.mxu0 0
        %1525 = vmatpush1.bf16.msra.mxu0 0
        %1526 = vmatprep.subr.bf16.mxu0 0
        %1527 = vmatpush1.bf16.msra.mxu0 0
        %1528 = vmatprep.subr.bf16.mxu0 0
        %1529 = vmatpush1.bf16.msra.mxu0 0
        %1530 = vmatprep.subr.bf16.mxu0 0
        %1531 = vmatpush1.bf16.msra.mxu0 0
        %1532 = vmatprep.subr.bf16.mxu0 0
        %1533 = vmatpush1.bf16.msra.mxu0 0
        %1534 = vmatprep.subr.bf16.mxu0 0
        %1535 = vmatpush1.bf16.msra.mxu0 0
        %1536 = vmatprep.subr.bf16.mxu0 0
        %1537 = vmatpush1.bf16.msra.mxu0 0
        %1538 = vmatprep.subr.bf16.mxu0 0
        %1539 = vmatpush1.bf16.msra.mxu0 0
        %1540 = vmatprep.subr.bf16.mxu0 0
        %1541 = vmatpush1.bf16.msra.mxu0 0
        %1542 = vmatprep.subr.bf16.mxu0 0
        %1543 = vmatpush1.bf16.msra.mxu0 0
        %1544 = vmatprep.subr.bf16.mxu0 0
        %1545 = vmatpush1.bf16.msra.mxu0 0
        %1546 = vmatprep.mubr.bf16.mxu0 0
        %1547 = vmatmul.mubr.bf16.gmra.mrb[0].mxu0 %v1260
        %v1548 = vpop.f32.mrb[0].mxu0
        %v1549 = vadd.f32 %v1495, %v1548
        %v1550 = vpop.f32.mrb[0].mxu0
        %v1551 = vpop.f32.mrb[0].mxu0
        %v1552 = vpop.f32.mrb[0].mxu0
        %1553 = vdwg.mxu0
        %v1558 = vunpack.c.l.b16 %v1484
        %v1559 = vunpack.c.l.b16 %v1485
        %v1560 = vunpack.c.l.b16 %v1486
        %v1561 = vunpack.c.l.b16 %v1487
        %v1562 = vpack.c.b16 %v1559, %v1558
        %v1563 = vpack.c.b16 %v1561, %v1560
        %1566 = vmatprep.subr.bf16.mxu0 0
        %1567 = vmatpush1.bf16.msra.mxu0 %v1562
        %1568 = vmatprep.subr.bf16.mxu0 0
        %1569 = vmatpush1.bf16.msra.mxu0 %v1563
        %1570 = vmatprep.subr.bf16.mxu0 0
        %1571 = vmatpush1.bf16.msra.mxu0 0
        %1572 = vmatprep.subr.bf16.mxu0 0
        %1573 = vmatpush1.bf16.msra.mxu0 0
        %1574 = vmatprep.subr.bf16.mxu0 0
        %1575 = vmatpush1.bf16.msra.mxu0 0
        %1576 = vmatprep.subr.bf16.mxu0 0
        %1577 = vmatpush1.bf16.msra.mxu0 0
        %1578 = vmatprep.subr.bf16.mxu0 0
        %1579 = vmatpush1.bf16.msra.mxu0 0
        %1580 = vmatprep.subr.bf16.mxu0 0
        %1581 = vmatpush1.bf16.msra.mxu0 0
        %1582 = vmatprep.subr.bf16.mxu0 0
        %1583 = vmatpush1.bf16.msra.mxu0 0
        %1584 = vmatprep.subr.bf16.mxu0 0
        %1585 = vmatpush1.bf16.msra.mxu0 0
        %1586 = vmatprep.subr.bf16.mxu0 0
        %1587 = vmatpush1.bf16.msra.mxu0 0
        %1588 = vmatprep.subr.bf16.mxu0 0
        %1589 = vmatpush1.bf16.msra.mxu0 0
        %1590 = vmatprep.subr.bf16.mxu0 0
        %1591 = vmatpush1.bf16.msra.mxu0 0
        %1592 = vmatprep.subr.bf16.mxu0 0
        %1593 = vmatpush1.bf16.msra.mxu0 0
        %1594 = vmatprep.subr.bf16.mxu0 0
        %1595 = vmatpush1.bf16.msra.mxu0 0
        %1596 = vmatprep.subr.bf16.mxu0 0
        %1597 = vmatpush1.bf16.msra.mxu0 0
        %1598 = vmatprep.mubr.bf16.mxu0 0
        %1599 = vmatmul.mubr.bf16.gmra.mrb[0].mxu0 %v1260
        %v1600 = vpop.f32.mrb[0].mxu0
        %v1601 = vadd.f32 %v1499, %v1600
        %v1602 = vpop.f32.mrb[0].mxu0
        %v1603 = vpop.f32.mrb[0].mxu0
        %v1604 = vpop.f32.mrb[0].mxu0
        %1605 = vdwg.mxu0
        %v1606 = vpack.c.bf16 %v1297, %v1297
        %v1607 = vpack.c.bf16 %v1349, %v1349
        %v1608 = vpack.c.bf16 %v1423, %v1423
        %v1609 = vpack.c.bf16 %v1475, %v1475
        %v1611 = vlaneseq
        %v1612 = vshrl.u32 %v1611, 7
        %v1613 = vsub.s32 0, %v1612
        %v1614 = vrot.slane %v1223, %v1613
        %vm1616 = vcmask 130048
        %v1618 = vsel %vm1616, %v1606, 0
        %v1621 = vsel %vm1616, %v1608, 0
        %1623 = vmatprep.subr.bf16.mxu0 0
        %1624 = vmatpush1.bf16.xpose.msra.mxu0 %v1621
        %1625 = vmatprep.subr.bf16.mxu0 0
        %1626 = vmatpush1.bf16.xpose.msra.mxu0 0
        %1627 = vmatprep.subr.bf16.mxu0 0
        %1628 = vmatpush1.bf16.xpose.msra.mxu0 0
        %1629 = vmatprep.subr.bf16.mxu0 0
        %1630 = vmatpush1.bf16.xpose.msra.mxu0 0
        %1631 = vmatprep.subr.bf16.mxu0 0
        %1632 = vmatpush1.bf16.xpose.msra.mxu0 0
        %1633 = vmatprep.subr.bf16.mxu0 0
        %1634 = vmatpush1.bf16.xpose.msra.mxu0 0
        %1635 = vmatprep.subr.bf16.mxu0 0
        %1636 = vmatpush1.bf16.xpose.msra.mxu0 0
        %1637 = vmatprep.subr.bf16.mxu0 0
        %1638 = vmatpush1.bf16.xpose.msra.mxu0 0
        %1639 = vmatprep.subr.bf16.mxu0 0
        %1640 = vmatpush1.bf16.xpose.msra.mxu0 0
        %1641 = vmatprep.subr.bf16.mxu0 0
        %1642 = vmatpush1.bf16.xpose.msra.mxu0 0
        %1643 = vmatprep.subr.bf16.mxu0 0
        %1644 = vmatpush1.bf16.xpose.msra.mxu0 0
        %1645 = vmatprep.subr.bf16.mxu0 0
        %1646 = vmatpush1.bf16.xpose.msra.mxu0 0
        %1647 = vmatprep.subr.bf16.mxu0 0
        %1648 = vmatpush1.bf16.xpose.msra.mxu0 0
        %1649 = vmatprep.subr.bf16.mxu0 0
        %1650 = vmatpush1.bf16.xpose.msra.mxu0 0
        %1651 = vmatprep.subr.bf16.mxu0 0
        %1652 = vmatpush1.bf16.xpose.msra.mxu0 0
        %1653 = vmatprep.subr.bf16.mxu0 0
        %1654 = vmatpush1.bf16.xpose.msra.mxu0 0
        %1655 = vmatprep.mubr.bf16.mxu0 0
        %1656 = vmatmul.mubr.bf16.gmra.mrb[0].mxu0 %v1618
        %v1657 = vpop.f32.mrb[0].mxu0
        %v1658 = vadd.f32 %v1614, %v1657
        %v1659 = vpop.f32.mrb[0].mxu0
        %v1660 = vpop.f32.mrb[0].mxu0
        %v1661 = vpop.f32.mrb[0].mxu0
        %1662 = vdwg.mxu0
        %v1664 = vsel %vm1616, %v1607, 0
        %v1667 = vsel %vm1616, %v1609, 0
        %1669 = vmatprep.subr.bf16.mxu0 0
        %1670 = vmatpush1.bf16.xpose.msra.mxu0 %v1667
        %1671 = vmatprep.subr.bf16.mxu0 0
        %1672 = vmatpush1.bf16.xpose.msra.mxu0 0
        %1673 = vmatprep.subr.bf16.mxu0 0
        %1674 = vmatpush1.bf16.xpose.msra.mxu0 0
        %1675 = vmatprep.subr.bf16.mxu0 0
        %1676 = vmatpush1.bf16.xpose.msra.mxu0 0
        %1677 = vmatprep.subr.bf16.mxu0 0
        %1678 = vmatpush1.bf16.xpose.msra.mxu0 0
        %1679 = vmatprep.subr.bf16.mxu0 0
        %1680 = vmatpush1.bf16.xpose.msra.mxu0 0
        %1681 = vmatprep.subr.bf16.mxu0 0
        %1682 = vmatpush1.bf16.xpose.msra.mxu0 0
        %1683 = vmatprep.subr.bf16.mxu0 0
        %1684 = vmatpush1.bf16.xpose.msra.mxu0 0
        %1685 = vmatprep.subr.bf16.mxu0 0
        %1686 = vmatpush1.bf16.xpose.msra.mxu0 0
        %1687 = vmatprep.subr.bf16.mxu0 0
        %1688 = vmatpush1.bf16.xpose.msra.mxu0 0
        %1689 = vmatprep.subr.bf16.mxu0 0
        %1690 = vmatpush1.bf16.xpose.msra.mxu0 0
        %1691 = vmatprep.subr.bf16.mxu0 0
        %1692 = vmatpush1.bf16.xpose.msra.mxu0 0
        %1693 = vmatprep.subr.bf16.mxu0 0
        %1694 = vmatpush1.bf16.xpose.msra.mxu0 0
        %1695 = vmatprep.subr.bf16.mxu0 0
        %1696 = vmatpush1.bf16.xpose.msra.mxu0 0
        %1697 = vmatprep.subr.bf16.mxu0 0
        %1698 = vmatpush1.bf16.xpose.msra.mxu0 0
        %1699 = vmatprep.subr.bf16.mxu0 0
        %1700 = vmatpush1.bf16.xpose.msra.mxu0 0
        %1701 = vmatprep.mubr.bf16.mxu0 0
        %1702 = vmatmul.mubr.bf16.gmra.mrb[0].mxu0 %v1664
        %v1703 = vpop.f32.mrb[0].mxu0
        %v1704 = vadd.f32 %v1614, %v1703
        %v1705 = vpop.f32.mrb[0].mxu0
        %v1706 = vpop.f32.mrb[0].mxu0
        %v1707 = vpop.f32.mrb[0].mxu0
        %1708 = vdwg.mxu0
        %vm1709 = vcmask 64512
        %v1710 = vsel %vm1709, %v1658, -inf
        %1711 = vmax.xlane.f32.xlu0 %v1710
        %v1712 = vpop.xlane.xlu0 %1711
        %v1713 = vsel %vm1709, %v1704, -inf
        %1714 = vmax.xlane.f32.xlu0 %v1713
        %v1715 = vpop.xlane.xlu0 %1714
        %v1716 = vsub.f32 %v1658, %v1712
        %v1717 = vsub.f32 %v1704, %v1715
        %v1718 = vmul.f32 %v1716, 1.442695
        %v1719 = vpow.pop %v1718
        %v1720 = vmul.f32 %v1717, 1.442695
        %v1721 = vpow.pop %v1720
        %v1722 = vsel %vm1709, %v1719, 0.0
        %1723 = vadd.xlane.f32.xlu0 %v1722
        %v1724 = vpop.xlane.xlu0 %1723
        %v1725 = vsel %vm1709, %v1721, 0.0
        %1726 = vadd.xlane.f32.xlu0 %v1725
        %v1727 = vpop.xlane.xlu0 %1726
        %v1728 = vrcp.pop %v1724
        %v1729 = vrcp.pop %v1727
        %v1730 = vmul.f32 %v1719, %v1728
        %v1731 = vmul.f32 %v1721, %v1729
        %v1732 = vpack.c.bf16 %v1730, %v1730
        %v1733 = vpack.c.bf16 %v1731, %v1731
        %v1734 = vpack.c.bf16 %v1549, %v1549
        %v1735 = vpack.c.bf16 %v1601, %v1601
        %v1737 = vsel %vm1709, %v1732, 0
        %vm1739 = vcmask 1043456
        %v1741 = vsel %vm1739, %v1734, 0
        %1743 = vmatprep.subr.bf16.mxu0 0
        %1744 = vmatpush1.bf16.msra.mxu0 %v1741
        %1745 = vmatprep.subr.bf16.mxu0 0
        %1746 = vmatpush1.bf16.msra.mxu0 0
        %1747 = vmatprep.subr.bf16.mxu0 0
        %1748 = vmatpush1.bf16.msra.mxu0 0
        %1749 = vmatprep.subr.bf16.mxu0 0
        %1750 = vmatpush1.bf16.msra.mxu0 0
        %1751 = vmatprep.subr.bf16.mxu0 0
        %1752 = vmatpush1.bf16.msra.mxu0 0
        %1753 = vmatprep.subr.bf16.mxu0 0
        %1754 = vmatpush1.bf16.msra.mxu0 0
        %1755 = vmatprep.subr.bf16.mxu0 0
        %1756 = vmatpush1.bf16.msra.mxu0 0
        %1757 = vmatprep.subr.bf16.mxu0 0
        %1758 = vmatpush1.bf16.msra.mxu0 0
        %1759 = vmatprep.subr.bf16.mxu0 0
        %1760 = vmatpush1.bf16.msra.mxu0 0
        %1761 = vmatprep.subr.bf16.mxu0 0
        %1762 = vmatpush1.bf16.msra.mxu0 0
        %1763 = vmatprep.subr.bf16.mxu0 0
        %1764 = vmatpush1.bf16.msra.mxu0 0
        %1765 = vmatprep.subr.bf16.mxu0 0
        %1766 = vmatpush1.bf16.msra.mxu0 0
        %1767 = vmatprep.subr.bf16.mxu0 0
        %1768 = vmatpush1.bf16.msra.mxu0 0
        %1769 = vmatprep.subr.bf16.mxu0 0
        %1770 = vmatpush1.bf16.msra.mxu0 0
        %1771 = vmatprep.subr.bf16.mxu0 0
        %1772 = vmatpush1.bf16.msra.mxu0 0
        %1773 = vmatprep.subr.bf16.mxu0 0
        %1774 = vmatpush1.bf16.msra.mxu0 0
        %1775 = vmatprep.mubr.bf16.mxu0 0
        %1776 = vmatmul.mubr.bf16.gmra.mrb[0].mxu0 %v1737
        %v1777 = vpop.f32.mrb[0].mxu0
        %v1778 = vadd.f32 0.0, %v1777
        %v1779 = vpop.f32.mrb[0].mxu0
        %v1780 = vpop.f32.mrb[0].mxu0
        %v1781 = vpop.f32.mrb[0].mxu0
        %1782 = vdwg.mxu0
        %v1784 = vsel %vm1709, %v1733, 0
        %v1787 = vsel %vm1739, %v1735, 0
        %1789 = vmatprep.subr.bf16.mxu0 0
        %1790 = vmatpush1.bf16.msra.mxu0 %v1787
        %1791 = vmatprep.subr.bf16.mxu0 0
        %1792 = vmatpush1.bf16.msra.mxu0 0
        %1793 = vmatprep.subr.bf16.mxu0 0
        %1794 = vmatpush1.bf16.msra.mxu0 0
        %1795 = vmatprep.subr.bf16.mxu0 0
        %1796 = vmatpush1.bf16.msra.mxu0 0
        %1797 = vmatprep.subr.bf16.mxu0 0
        %1798 = vmatpush1.bf16.msra.mxu0 0
        %1799 = vmatprep.subr.bf16.mxu0 0
        %1800 = vmatpush1.bf16.msra.mxu0 0
        %1801 = vmatprep.subr.bf16.mxu0 0
        %1802 = vmatpush1.bf16.msra.mxu0 0
        %1803 = vmatprep.subr.bf16.mxu0 0
        %1804 = vmatpush1.bf16.msra.mxu0 0
        %1805 = vmatprep.subr.bf16.mxu0 0
        %1806 = vmatpush1.bf16.msra.mxu0 0
        %1807 = vmatprep.subr.bf16.mxu0 0
        %1808 = vmatpush1.bf16.msra.mxu0 0
        %1809 = vmatprep.subr.bf16.mxu0 0
        %1810 = vmatpush1.bf16.msra.mxu0 0
        %1811 = vmatprep.subr.bf16.mxu0 0
        %1812 = vmatpush1.bf16.msra.mxu0 0
        %1813 = vmatprep.subr.bf16.mxu0 0
        %1814 = vmatpush1.bf16.msra.mxu0 0
        %1815 = vmatprep.subr.bf16.mxu0 0
        %1816 = vmatpush1.bf16.msra.mxu0 0
        %1817 = vmatprep.subr.bf16.mxu0 0
        %1818 = vmatpush1.bf16.msra.mxu0 0
        %1819 = vmatprep.subr.bf16.mxu0 0
        %1820 = vmatpush1.bf16.msra.mxu0 0
        %1821 = vmatprep.mubr.bf16.mxu0 0
        %1822 = vmatmul.mubr.bf16.gmra.mrb[0].mxu0 %v1784
        %v1823 = vpop.f32.mrb[0].mxu0
        %v1824 = vadd.f32 0.0, %v1823
        %v1825 = vpop.f32.mrb[0].mxu0
        %v1826 = vpop.f32.mrb[0].mxu0
        %v1827 = vpop.f32.mrb[0].mxu0
        %1828 = vdwg.mxu0
        %v1829 = vpack.c.bf16 %v1778, %v1778
        %v1830 = vpack.c.bf16 %v1824, %v1824
        %v1831 = vld [vmem:[%s1009] sm:$0xf]
        %v1832 = vld [vmem:[%s1009 + $0x4] sm:$0xf]
        %v1833 = vld [vmem:[%s1009 + $0x8] sm:$0xf]
        %v1834 = vld [vmem:[%s1009 + $0xc] sm:$0xf]
        %v1837 = vunpack.c.l.b16 %v1831
        %v1838 = vunpack.c.l.b16 %v1832
        %v1839 = vpack.c.b16 %v1838, %v1837
        %v1842 = vsel %vm1616, %v1829, 0
        %1844 = vmatprep.subr.bf16.mxu0 0
        %1845 = vmatpush1.bf16.msra.mxu0 %v1839
        %1846 = vmatprep.subr.bf16.mxu0 0
        %1847 = vmatpush1.bf16.msra.mxu0 0
        %1848 = vmatprep.subr.bf16.mxu0 0
        %1849 = vmatpush1.bf16.msra.mxu0 0
        %1850 = vmatprep.subr.bf16.mxu0 0
        %1851 = vmatpush1.bf16.msra.mxu0 0
        %1852 = vmatprep.subr.bf16.mxu0 0
        %1853 = vmatpush1.bf16.msra.mxu0 0
        %1854 = vmatprep.subr.bf16.mxu0 0
        %1855 = vmatpush1.bf16.msra.mxu0 0
        %1856 = vmatprep.subr.bf16.mxu0 0
        %1857 = vmatpush1.bf16.msra.mxu0 0
        %1858 = vmatprep.subr.bf16.mxu0 0
        %1859 = vmatpush1.bf16.msra.mxu0 0
        %1860 = vmatprep.subr.bf16.mxu0 0
        %1861 = vmatpush1.bf16.msra.mxu0 0
        %1862 = vmatprep.subr.bf16.mxu0 0
        %1863 = vmatpush1.bf16.msra.mxu0 0
        %1864 = vmatprep.subr.bf16.mxu0 0
        %1865 = vmatpush1.bf16.msra.mxu0 0
        %1866 = vmatprep.subr.bf16.mxu0 0
        %1867 = vmatpush1.bf16.msra.mxu0 0
        %1868 = vmatprep.subr.bf16.mxu0 0
        %1869 = vmatpush1.bf16.msra.mxu0 0
        %1870 = vmatprep.subr.bf16.mxu0 0
        %1871 = vmatpush1.bf16.msra.mxu0 0
        %1872 = vmatprep.subr.bf16.mxu0 0
        %1873 = vmatpush1.bf16.msra.mxu0 0
        %1874 = vmatprep.subr.bf16.mxu0 0
        %1875 = vmatpush1.bf16.msra.mxu0 0
        %1876 = vmatprep.mubr.bf16.mxu0 0
        %1877 = vmatmul.mubr.bf16.gmra.mrb[0].mxu0 %v1842
        %v1878 = vpop.f32.mrb[0].mxu0
        %v1879 = vadd.f32 0.0, %v1878
        %v1880 = vpop.f32.mrb[0].mxu0
        %v1881 = vpop.f32.mrb[0].mxu0
        %v1882 = vpop.f32.mrb[0].mxu0
        %1883 = vdwg.mxu0
        %v1886 = vunpack.c.l.b16 %v1833
        %v1887 = vunpack.c.l.b16 %v1834
        %v1888 = vpack.c.b16 %v1887, %v1886
        %v1891 = vsel %vm1616, %v1830, 0
        %1893 = vmatprep.subr.bf16.mxu0 0
        %1894 = vmatpush1.bf16.msra.mxu0 %v1888
        %1895 = vmatprep.subr.bf16.mxu0 0
        %1896 = vmatpush1.bf16.msra.mxu0 0
        %1897 = vmatprep.subr.bf16.mxu0 0
        %1898 = vmatpush1.bf16.msra.mxu0 0
        %1899 = vmatprep.subr.bf16.mxu0 0
        %1900 = vmatpush1.bf16.msra.mxu0 0
        %1901 = vmatprep.subr.bf16.mxu0 0
        %1902 = vmatpush1.bf16.msra.mxu0 0
        %1903 = vmatprep.subr.bf16.mxu0 0
        %1904 = vmatpush1.bf16.msra.mxu0 0
        %1905 = vmatprep.subr.bf16.mxu0 0
        %1906 = vmatpush1.bf16.msra.mxu0 0
        %1907 = vmatprep.subr.bf16.mxu0 0
        %1908 = vmatpush1.bf16.msra.mxu0 0
        %1909 = vmatprep.subr.bf16.mxu0 0
        %1910 = vmatpush1.bf16.msra.mxu0 0
        %1911 = vmatprep.subr.bf16.mxu0 0
        %1912 = vmatpush1.bf16.msra.mxu0 0
        %1913 = vmatprep.subr.bf16.mxu0 0
        %1914 = vmatpush1.bf16.msra.mxu0 0
        %1915 = vmatprep.subr.bf16.mxu0 0
        %1916 = vmatpush1.bf16.msra.mxu0 0
        %1917 = vmatprep.subr.bf16.mxu0 0
        %1918 = vmatpush1.bf16.msra.mxu0 0
        %1919 = vmatprep.subr.bf16.mxu0 0
        %1920 = vmatpush1.bf16.msra.mxu0 0
        %1921 = vmatprep.subr.bf16.mxu0 0
        %1922 = vmatpush1.bf16.msra.mxu0 0
        %1923 = vmatprep.subr.bf16.mxu0 0
        %1924 = vmatpush1.bf16.msra.mxu0 0
        %1925 = vmatprep.mubr.bf16.mxu0 0
        %1926 = vmatmul.mubr.bf16.gmra.mrb[0].mxu0 %v1891
        %v1927 = vpop.f32.mrb[0].mxu0
        %v1928 = vadd.f32 0.0, %v1927
        %v1929 = vpop.f32.mrb[0].mxu0
        %v1930 = vpop.f32.mrb[0].mxu0
        %v1931 = vpop.f32.mrb[0].mxu0
        %1932 = vdwg.mxu0
        %v1933 = vsel %vm1258, %v1879, 0.0
        %v1934 = vsel %vm1258, %v1928, 0.0
        %v1935 = vadd.f32 %v1933, %v1934
        %v1936 = vld [vmem:[%s1017] sm:$0x1]
        %v1938 = vlaneseq
        %v1939 = vshrl.u32 %v1938, 7
        %v1940 = vsub.s32 0, %v1939
        %v1941 = vrot.slane %v1936, %v1940
        %v1943 = vadd.f32 %v1935, %v1941
        %v1944 = vadd.f32 %v1943, %v1221
        %v1945 = vld [vmem:[%s1025] sm:$0x1]
        %v1946 = vld [vmem:[%s1033] sm:$0x1]
        %v1947 = vsel %vm1258, %v1944, 0.0
        %1948 = vadd.xlane.f32.xlu0 %v1947
        %v1949 = vpop.xlane.xlu0 %1948
        %v1950 = vrcp.pop 32.0
        %v1951 = vmul.f32 %v1949, %v1950
        %v1952 = vsub.f32 %v1944, %v1951
        %v1953 = vmul.f32 %v1952, %v1952
        %v1954 = vsel %vm1258, %v1953, 0.0
        %1955 = vadd.xlane.f32.xlu0 %v1954
        %v1956 = vpop.xlane.xlu0 %1955
        %v1957 = vmul.f32 %v1956, %v1950
        %v1958 = vadd.f32 %v1957, 1e-12
        %v1959 = vrsqrt.pop %v1958
        %v1960 = vmul.f32 %v1952, %v1959
        %v1962 = vlaneseq
        %v1963 = vshrl.u32 %v1962, 7
        %v1964 = vsub.s32 0, %v1963
        %v1965 = vrot.slane %v1945, %v1964
        %v1967 = vmul.f32 %v1960, %v1965
        %v1969 = vlaneseq
        %v1970 = vshrl.u32 %v1969, 7
        %v1971 = vsub.s32 0, %v1970
        %v1972 = vrot.slane %v1946, %v1971
        %v1974 = vadd.f32 %v1967, %v1972
        %v1975 = vpack.c.bf16 %v1974, %v1974
        %v1976 = vld [vmem:[%s1042] sm:$0xf]
        %v1977 = vld [vmem:[%s1042 + $0x4] sm:$0xf]
        %v1978 = vld [vmem:[%s1042 + $0x8] sm:$0xf]
        %v1979 = vld [vmem:[%s1042 + $0xc] sm:$0xf]
        %v1980 = vld [vmem:[%s1050] sm:$0x1]
        %v1982 = vlaneseq
        %v1983 = vshrl.u32 %v1982, 7
        %v1984 = vsub.s32 0, %v1983
        %v1985 = vrot.slane %v1980, %v1984
        %v1991 = vunpack.c.l.b16 %v1976
        %v1992 = vunpack.c.l.b16 %v1977
        %v1993 = vunpack.c.l.b16 %v1978
        %v1994 = vunpack.c.l.b16 %v1979
        %v1995 = vpack.c.b16 %v1992, %v1991
        %v1996 = vpack.c.b16 %v1994, %v1993
        %v2000 = vsel %vm1258, %v1975, 0
        %2002 = vmatprep.subr.bf16.mxu0 0
        %2003 = vmatpush1.bf16.msra.mxu0 %v1995
        %2004 = vmatprep.subr.bf16.mxu0 0
        %2005 = vmatpush1.bf16.msra.mxu0 %v1996
        %2006 = vmatprep.subr.bf16.mxu0 0
        %2007 = vmatpush1.bf16.msra.mxu0 0
        %2008 = vmatprep.subr.bf16.mxu0 0
        %2009 = vmatpush1.bf16.msra.mxu0 0
        %2010 = vmatprep.subr.bf16.mxu0 0
        %2011 = vmatpush1.bf16.msra.mxu0 0
        %2012 = vmatprep.subr.bf16.mxu0 0
        %2013 = vmatpush1.bf16.msra.mxu0 0
        %2014 = vmatprep.subr.bf16.mxu0 0
        %2015 = vmatpush1.bf16.msra.mxu0 0
        %2016 = vmatprep.subr.bf16.mxu0 0
        %2017 = vmatpush1.bf16.msra.mxu0 0
        %2018 = vmatprep.subr.bf16.mxu0 0
        %2019 = vmatpush1.bf16.msra.mxu0 0
        %2020 = vmatprep.subr.bf16.mxu0 0
        %2021 = vmatpush1.bf16.msra.mxu0 0
        %2022 = vmatprep.subr.bf16.mxu0 0
        %2023 = vmatpush1.bf16.msra.mxu0 0
        %2024 = vmatprep.subr.bf16.mxu0 0
        %2025 = vmatpush1.bf16.msra.mxu0 0
        %2026 = vmatprep.subr.bf16.mxu0 0
        %2027 = vmatpush1.bf16.msra.mxu0 0
        %2028 = vmatprep.subr.bf16.mxu0 0
        %2029 = vmatpush1.bf16.msra.mxu0 0
        %2030 = vmatprep.subr.bf16.mxu0 0
        %2031 = vmatpush1.bf16.msra.mxu0 0
        %2032 = vmatprep.subr.bf16.mxu0 0
        %2033 = vmatpush1.bf16.msra.mxu0 0
        %2034 = vmatprep.mubr.bf16.mxu0 0
        %2035 = vmatmul.mubr.bf16.gmra.mrb[0].mxu0 %v2000
        %v2036 = vpop.f32.mrb[0].mxu0
        %v2037 = vadd.f32 %v1985, %v2036
        %v2038 = vpop.f32.mrb[0].mxu0
        %v2039 = vpop.f32.mrb[0].mxu0
        %v2040 = vpop.f32.mrb[0].mxu0
        %2041 = vdwg.mxu0
        %v2042 = vmul.f32 %v2037, 0.5
        %v2043 = vmul.f32 %v2037, 0.70710677
        %v2044 = verf.f32.pop %v2043
        %v2045 = vadd.f32 %v2044, 1.0
        %v2046 = vmul.f32 %v2042, %v2045
        %v2047 = vpack.c.bf16 %v2046, %v2046
        %v2048 = vld [vmem:[%s1059] sm:$0xf]
        %v2049 = vld [vmem:[%s1059 + $0x4] sm:$0xf]
        %v2050 = vld [vmem:[%s1059 + $0x8] sm:$0xf]
        %v2051 = vld [vmem:[%s1059 + $0xc] sm:$0xf]
        %v2052 = vld [vmem:[%s1059 + $0x10] sm:$0xf]
        %v2053 = vld [vmem:[%s1059 + $0x14] sm:$0xf]
        %v2054 = vld [vmem:[%s1059 + $0x18] sm:$0xf]
        %v2055 = vld [vmem:[%s1059 + $0x1c] sm:$0xf]
        %v2056 = vld [vmem:[%s1059 + $0x20] sm:$0xf]
        %v2057 = vld [vmem:[%s1059 + $0x24] sm:$0xf]
        %v2058 = vld [vmem:[%s1059 + $0x28] sm:$0xf]
        %v2059 = vld [vmem:[%s1059 + $0x2c] sm:$0xf]
        %v2060 = vld [vmem:[%s1059 + $0x30] sm:$0xf]
        %v2061 = vld [vmem:[%s1059 + $0x34] sm:$0xf]
        %v2062 = vld [vmem:[%s1059 + $0x38] sm:$0xf]
        %v2063 = vld [vmem:[%s1059 + $0x3c] sm:$0xf]
        %v2064 = vld [vmem:[%s1067] sm:$0x1]
        %v2066 = vlaneseq
        %v2067 = vshrl.u32 %v2066, 7
        %v2068 = vsub.s32 0, %v2067
        %v2069 = vrot.slane %v2064, %v2068
        %v2087 = vunpack.c.l.b16 %v2048
        %v2088 = vunpack.c.l.b16 %v2049
        %v2089 = vunpack.c.l.b16 %v2050
        %v2090 = vunpack.c.l.b16 %v2051
        %v2091 = vunpack.c.l.b16 %v2052
        %v2092 = vunpack.c.l.b16 %v2053
        %v2093 = vunpack.c.l.b16 %v2054
        %v2094 = vunpack.c.l.b16 %v2055
        %v2095 = vunpack.c.l.b16 %v2056
        %v2096 = vunpack.c.l.b16 %v2057
        %v2097 = vunpack.c.l.b16 %v2058
        %v2098 = vunpack.c.l.b16 %v2059
        %v2099 = vunpack.c.l.b16 %v2060
        %v2100 = vunpack.c.l.b16 %v2061
        %v2101 = vunpack.c.l.b16 %v2062
        %v2102 = vunpack.c.l.b16 %v2063
        %v2103 = vpack.c.b16 %v2088, %v2087
        %v2104 = vpack.c.b16 %v2090, %v2089
        %v2105 = vpack.c.b16 %v2092, %v2091
        %v2106 = vpack.c.b16 %v2094, %v2093
        %v2107 = vpack.c.b16 %v2096, %v2095
        %v2108 = vpack.c.b16 %v2098, %v2097
        %v2109 = vpack.c.b16 %v2100, %v2099
        %v2110 = vpack.c.b16 %v2102, %v2101
        %2119 = vmatprep.subr.bf16.mxu0 0
        %2120 = vmatpush1.bf16.msra.mxu0 %v2103
        %2121 = vmatprep.subr.bf16.mxu0 0
        %2122 = vmatpush1.bf16.msra.mxu0 %v2104
        %2123 = vmatprep.subr.bf16.mxu0 0
        %2124 = vmatpush1.bf16.msra.mxu0 %v2105
        %2125 = vmatprep.subr.bf16.mxu0 0
        %2126 = vmatpush1.bf16.msra.mxu0 %v2106
        %2127 = vmatprep.subr.bf16.mxu0 0
        %2128 = vmatpush1.bf16.msra.mxu0 %v2107
        %2129 = vmatprep.subr.bf16.mxu0 0
        %2130 = vmatpush1.bf16.msra.mxu0 %v2108
        %2131 = vmatprep.subr.bf16.mxu0 0
        %2132 = vmatpush1.bf16.msra.mxu0 %v2109
        %2133 = vmatprep.subr.bf16.mxu0 0
        %2134 = vmatpush1.bf16.msra.mxu0 %v2110
        %2135 = vmatprep.subr.bf16.mxu0 0
        %2136 = vmatpush1.bf16.msra.mxu0 0
        %2137 = vmatprep.subr.bf16.mxu0 0
        %2138 = vmatpush1.bf16.msra.mxu0 0
        %2139 = vmatprep.subr.bf16.mxu0 0
        %2140 = vmatpush1.bf16.msra.mxu0 0
        %2141 = vmatprep.subr.bf16.mxu0 0
        %2142 = vmatpush1.bf16.msra.mxu0 0
        %2143 = vmatprep.subr.bf16.mxu0 0
        %2144 = vmatpush1.bf16.msra.mxu0 0
        %2145 = vmatprep.subr.bf16.mxu0 0
        %2146 = vmatpush1.bf16.msra.mxu0 0
        %2147 = vmatprep.subr.bf16.mxu0 0
        %2148 = vmatpush1.bf16.msra.mxu0 0
        %2149 = vmatprep.subr.bf16.mxu0 0
        %2150 = vmatpush1.bf16.msra.mxu0 0
        %2151 = vmatprep.mubr.bf16.mxu0 0
        %2152 = vmatmul.mubr.bf16.gmra.mrb[0].mxu0 %v2047
        %v2153 = vpop.f32.mrb[0].mxu0
        %v2154 = vadd.f32 %v2069, %v2153
        %v2155 = vpop.f32.mrb[0].mxu0
        %v2156 = vpop.f32.mrb[0].mxu0
        %v2157 = vpop.f32.mrb[0].mxu0
        %2158 = vdwg.mxu0
        %v2159 = vadd.f32 %v2154, %v1974
        %v2160 = vld [vmem:[%s1075] sm:$0x1]
        %v2161 = vld [vmem:[%s1083] sm:$0x1]
        %v2162 = vsel %vm1258, %v2159, 0.0
        %2163 = vadd.xlane.f32.xlu0 %v2162
        %v2164 = vpop.xlane.xlu0 %2163
        %v2165 = vmul.f32 %v2164, %v1950
        %v2166 = vsub.f32 %v2159, %v2165
        %v2167 = vmul.f32 %v2166, %v2166
        %v2168 = vsel %vm1258, %v2167, 0.0
        %2169 = vadd.xlane.f32.xlu0 %v2168
        %v2170 = vpop.xlane.xlu0 %2169
        %v2171 = vmul.f32 %v2170, %v1950
        %v2172 = vadd.f32 %v2171, 1e-12
        %v2173 = vrsqrt.pop %v2172
        %v2174 = vmul.f32 %v2166, %v2173
        %v2176 = vlaneseq
        %v2177 = vshrl.u32 %v2176, 7
        %v2178 = vsub.s32 0, %v2177
        %v2179 = vrot.slane %v2160, %v2178
        %v2181 = vmul.f32 %v2174, %v2179
        %v2183 = vlaneseq
        %v2184 = vshrl.u32 %v2183, 7
        %v2185 = vsub.s32 0, %v2184
        %v2186 = vrot.slane %v2161, %v2185
        %v2188 = vadd.f32 %v2181, %v2186
        %2189 = vst.msk [vmem:[#allocation2] sm:$0xff] %vm1258, %v2188
        %2190 = vst.msk [vmem:[%s1212] sm:$0xff] %vm1258, %v2188
        %s2191 = sand.u32 %s552, 1
        %s2192 = scalar_lea.sflag [#allocation5], %s2191
        %s2193 = sand.u32 %s552, 1
        %s2194 = smul.addr %s2193, 8
        %s2195 = scalar_lea.vmem [#allocation32], %s2194
        // Predicated region
        $region169: #{tpu_custom_call.1} parent=91 // pred_check
          %p2196 = pneg %p562
        $region170: #{tpu_custom_call.1} parent=91 // pred_check_branch
          %2198 = sbr.rel (%p2196) target = $region172
        $region171: #{tpu_custom_call.1} parent=91 // pred_region
          %s2200 = ssub.s32 128, 128
          %2201 = vsyncadd %s2192, %s2200
          %s2202 = smul.addr %s67, 2
          %s2203 = sadd.s32 %s66, %s2202
          %s2204 = smul.addr %s2203, 128
          %s2205 = scalar_lea.hbm %s18, %s2204
          %s2207 = sshll.u32 %s2195, 4
          %s2208 = int_to_ptr.vmem [resolvable:$true] %s2207
          %2210 = dma.vmem_to_hbm [thread:$0]  %s2208, 128, %s2205, %s2192
        $region172: #{tpu_custom_call.1} parent=91 // pred_fallthru
          _
      $region92: #{tpu_custom_call.1} parent=5 // pred_fallthru
        _
      %p2211 = scmp.le.s32.totalorder 2, %s57
      // Predicated region
      $region173: #{tpu_custom_call.1} parent=5 // pred_check
        %p2212 = pneg %p2211
      $region174: #{tpu_custom_call.1} parent=5 // pred_check_branch
        %2214 = sbr.rel (%p2212) target = $region176
      $region175: #{tpu_custom_call.1} parent=5 // pred_region
        %s2215 = ssub.s32 %s57, 2
        // Predicated region
        $region177: #{tpu_custom_call.1} parent=175 // pred_check
          %p2216 = pneg %p568
        $region178: #{tpu_custom_call.1} parent=175 // pred_check_branch
          %2218 = sbr.rel (%p2216) target = $region180
        $region179: #{tpu_custom_call.1} parent=175 // pred_region
          %s2219 = sand.u32 %s553, 1
          %s2220 = scalar_lea.sflag [#allocation5], %s2219
          %s2221 = sand.u32 %s553, 1
          %s2222 = smul.addr %s2221, 8
          %s2223 = scalar_lea.vmem [#allocation32], %s2222
          %2224 = dma.done %s2220, 128
        $region180: #{tpu_custom_call.1} parent=175 // pred_fallthru
          _
      $region176: #{tpu_custom_call.1} parent=5 // pred_fallthru
        _
    $region6: #{tpu_custom_call.1} parent=1 // loop_footer
      %s61 = sadd.s32 1, %s57
    $region7: #{tpu_custom_call.1} parent=1 // loop_footer_branch
      %56 = sbr.rel target = $region3
    $region8: #{tpu_custom_call.1} parent=1 // loop_exit
      _
    %2225 = vsyncpa [#allocation4], 1
    %s2226 = scalar_lea.sflag [#allocation4], 1
    %2227 = vsyncpa %s2226, 1
    %2228 = vsyncpa [#allocation7], 1
    %s2229 = scalar_lea.sflag [#allocation7], 1
    %2230 = vsyncpa %s2229, 1
    %2231 = vsyncpa [#allocation10], 1
    %s2232 = scalar_lea.sflag [#allocation10], 1
    %2233 = vsyncpa %s2232, 1
    %2234 = vsyncpa [#allocation13], 1
    %s2235 = scalar_lea.sflag [#allocation13], 1
    %2236 = vsyncpa %s2235, 1
    %2237 = vsyncpa [#allocation16], 1
    %s2238 = scalar_lea.sflag [#allocation16], 1
    %2239 = vsyncpa %s2238, 1
    %2240 = vsyncpa [#allocation19], 1
    %s2241 = scalar_lea.sflag [#allocation19], 1
    %2242 = vsyncpa %s2241, 1
    %2243 = vsyncpa [#allocation22], 1
    %s2244 = scalar_lea.sflag [#allocation22], 1
    %2245 = vsyncpa %s2244, 1
    %2246 = vsyncpa [#allocation25], 1
    %s2247 = scalar_lea.sflag [#allocation25], 1
    %2248 = vsyncpa %s2247, 1
    %2249 = vsyncpa [#allocation28], 1
    %s2250 = scalar_lea.sflag [#allocation28], 1
    %2251 = vsyncpa %s2250, 1
    %2252 = vsyncpa [#allocation31], 1
    %s2253 = scalar_lea.sflag [#allocation31], 1
    %2254 = vsyncpa %s2253, 1
    %2255 = vsyncpa [#allocation5], 1
    %s2256 = scalar_lea.sflag [#allocation5], 1
    %2257 = vsyncpa %s2256, 1

</llo_original>
